<compile_context>
chip_gen: v7x
topology: tpu7x:2x2x1
jax: 0.10.0
libtpu: 0.0.40
codegen_flags: <defaults>
</compile_context>

<pallas_src>
import functools

import jax
import jax.numpy as jnp
from jax.experimental import pallas as pl
from jax.experimental.pallas import tpu as pltpu

block_size = 8
n_embed = 32
NUM_HEADS = 4
HEAD_SIZE = n_embed // NUM_HEADS  # 8 -> concat of heads == n_embed


def fuse_mha_params(wk, wq, wv, wp):
    """One-time parameter fusion. Call at init, NOT on the per-forward path.

    wk/wq/wv: (H, C, hs) per-head projection weights (already (in, out)).
    wp:       (C, C) output projection weight (in, out).

    Returns:
      w_qkv_h: (H, C, 3*hs) fused per-head QKV weight, columns [Q | K | V],
               with the attention scale C**-0.5 folded into the Q columns
               (the PyTorch module scales by C = n_embed, not head_size).
      wp_h:    (C, C) reshaped to (H, hs, C) so head h's block is wp_h[h].
    """
    H, C, hs = wq.shape
    scale = C ** (-0.5)
    w_qkv_h = jnp.concatenate([wq * scale, wk, wv], axis=-1)   # (H, C, 3*hs)
    wp_h = wp.reshape(H, hs, C)                                # (H, hs, C)
    return w_qkv_h, wp_h


def mha_kernel(x_ref, wqkv_ref, wp_ref, bp_ref, o_ref, *, batch, seq, num_heads):
    """Single grid step: full batch, all heads batched on a leading axis."""
    BT, C = x_ref.shape
    B, T, H = batch, seq, num_heads
    hs = C // H

    x2d = x_ref[...]                                            # (B*T, C) f32

    # Batched fused-QKV projection (one einsum, head dim leading). The softmax
    # scale is already folded into the Q columns of wqkv at init time.
    xh = jnp.broadcast_to(x2d[None, :, :], (H, BT, C))          # (H, B*T, C)
    qkv = jnp.einsum('hnc,hcd->hnd', xh, wqkv_ref[...],
                     preferred_element_type=jnp.float32)        # (H, B*T, 3*hs)

    # Three lane slices total (was 12 per-head ones), then fold (h, b) into a
    # single batch axis g = h*B + b.  These reshapes only split/merge
    # leading+sublane dims; the lane dim (hs) is untouched -> no relayout.
    q = qkv[:, :, 0 * hs:1 * hs].reshape(H * B, T, hs)          # (H*B, T, hs)
    k = qkv[:, :, 1 * hs:2 * hs].reshape(H * B, T, hs)
    v = qkv[:, :, 2 * hs:3 * hs].reshape(H * B, T, hs)

    # Causal mask, shared by every (head, batch) pair.
    row = jax.lax.broadcasted_iota(jnp.int32, (T, T), 0)
    col = jax.lax.broadcasted_iota(jnp.int32, (T, T), 1)
    causal = (col <= row)[None, :, :]                           # (1, T, T)

    # All heads + batches in two batched einsums (batch = H*B = 8).
    wei = jnp.einsum('gqd,gkd->gqk', q, k,
                     preferred_element_type=jnp.float32)        # (H*B, T, T)
    # Large finite negative (NaN-safe); scale already applied via the weights.
    wei = jnp.where(causal, wei, -1e30)
    wei = wei - jnp.max(wei, axis=-1, keepdims=True)
    p = jnp.exp(wei)
    # Exact reciprocal keeps 1e-5 parity with the reference softmax;
    # pl.reciprocal(..., approx=True) (EUP slot) is available if the tolerance
    # is relaxed.  Same for bf16 MXU operands (v5e/v6e/v7x).
    p = p * pl.reciprocal(jnp.sum(p, axis=-1, keepdims=True), approx=False)

    hv = jnp.einsum('gqk,gkd->gqd', p, v,
                    preferred_element_type=jnp.float32)         # (H*B, T, hs)

    # Output projection: batched over heads and accumulated across heads
    # (out = sum_h hv_h @ Wp_h + b)  ->  no concatenate of head outputs.
    hv_h = hv.reshape(H, B * T, hs)                             # (H, B*T, hs)
    outc = jnp.einsum('hnd,hdc->hnc', hv_h, wp_ref[...],
                      preferred_element_type=jnp.float32)       # (H, B*T, C)
    out = jnp.sum(outc, axis=0) + bp_ref[...]                   # (B*T, C)

    # Stored as a 2-D (B*T, C) slab; the wrapper reshape back to (B, T, C) is
    # metadata-only.  A (B, T*C) lane-dense store would need a lane-changing
    # reshape here (lowering risk at sub-tile sizes for a 2 KB store).
    o_ref[...] = out.astype(o_ref.dtype)


def multi_head_attention(x, w_qkv_h, wp_h, bp):
    """x: (B, T, C); w_qkv_h: (H, C, 3*hs); wp_h: (H, hs, C); bp: (1, C)."""
    B, T, C = x.shape
    H = w_qkv_h.shape[0]

    x2d = x.reshape(B * T, C)       # free, row-major metadata reshape
    kernel = functools.partial(mha_kernel, batch=B, seq=T, num_heads=H)

    out2d = pl.pallas_call(
        kernel,
        out_shape=jax.ShapeDtypeStruct((B * T, C), x.dtype),
        grid_spec=pltpu.PrefetchScalarGridSpec(
            num_scalar_prefetch=0,
            grid=(1,),                                    # single step: whole batch
            in_specs=[
                pl.BlockSpec((B * T, C), lambda i: (0, 0)),          # x (flattened)
                pl.BlockSpec(w_qkv_h.shape, lambda i: (0, 0, 0)),    # fused QKV weight
                pl.BlockSpec(wp_h.shape, lambda i: (0, 0, 0)),       # proj weight (per-head)
                pl.BlockSpec((1, C), lambda i: (0, 0)),              # proj bias
            ],
            out_specs=pl.BlockSpec((B * T, C), lambda i: (0, 0)),
        ),
        compiler_params=pltpu.CompilerParams(
            dimension_semantics=("arbitrary",)),
    )(x2d, w_qkv_h, wp_h, bp)

    return out2d.reshape(B, T, C)


def reference(x, wk, wq, wv, wp, bp):
    """Pure-JAX reference matching the PyTorch forward."""
    B, T, C = x.shape
    scale = C ** (-0.5)
    mask = jnp.tril(jnp.ones((T, T), dtype=bool))
    outs = []
    for h in range(wk.shape[0]):
        k = x @ wk[h]
        q = x @ wq[h]
        v = x @ wv[h]
        wei = (q @ jnp.swapaxes(k, -2, -1)) * scale
        wei = jnp.where(mask, wei, -jnp.inf)
        wei = jax.nn.softmax(wei, axis=-1)
        outs.append(wei @ v)
    cat = jnp.concatenate(outs, axis=-1)
    return cat @ wp + bp[0]


if __name__ == "__main__":
    key = jax.random.PRNGKey(0)
    kx, kk, kq, kv, kp, kb = jax.random.split(key, 6)

    B, T, C = 2, block_size, n_embed
    x = jax.random.normal(kx, (B, T, C), dtype=jnp.float32)

    # Deterministic synthetic parameters (PyTorch-Linear-like scale),
    # stored as (in, out) so the kernel computes y = x @ W directly.
    init = 1.0 / jnp.sqrt(jnp.float32(C))
    wk = jax.random.uniform(kk, (NUM_HEADS, C, HEAD_SIZE), jnp.float32, -init, init)
    wq = jax.random.uniform(kq, (NUM_HEADS, C, HEAD_SIZE), jnp.float32, -init, init)
    wv = jax.random.uniform(kv, (NUM_HEADS, C, HEAD_SIZE), jnp.float32, -init, init)
    wp = jax.random.uniform(kp, (C, C), jnp.float32, -init, init)
    bp = jax.random.uniform(kb, (1, C), jnp.float32, -init, init)

    # One-time parameter fusion (hoisted out of the forward path; would live
    # at module-init time in a real model).
    w_qkv_h, wp_h = fuse_mha_params(wk, wq, wv, wp)
    w_qkv_h, wp_h = jax.block_until_ready((w_qkv_h, wp_h))

    out = multi_head_attention(x, w_qkv_h, wp_h, bp)
    out = jax.block_until_ready(out)

    ref = reference(x, wk, wq, wv, wp, bp)
    assert out.shape == (B, T, C)
    assert jnp.allclose(out, ref, atol=1e-5, rtol=1e-5), "mismatch vs reference"

    print("KERNEL_OK")
</pallas_src>

<mosaic_0001>
module attributes {stable_mosaic.version = 11 : i64} {
  func.func @mha_kernel(%arg0: i32, %arg1: memref<16x32xf32, #tpu.memory_space<vmem>>, %arg2: memref<4x32x24xf32, #tpu.memory_space<vmem>>, %arg3: memref<4x8x32xf32, #tpu.memory_space<vmem>>, %arg4: memref<1x32xf32, #tpu.memory_space<vmem>>, %arg5: memref<16x32xf32, #tpu.memory_space<vmem>>) attributes {dimension_semantics = [#tpu.dimension_semantics<arbitrary>], iteration_bounds = array<i64: 1>, scalar_prefetch = 0 : i64, scratch_operands = 0 : i64, tpu.core_type = #tpu.core_type<tc>, window_params = [{pipeline_mode = #tpu.pipeline_mode<synchronous>, transform_indices = @transform_0, window_bounds = array<i64: 16, 32>}, {pipeline_mode = #tpu.pipeline_mode<synchronous>, transform_indices = @transform_1, window_bounds = array<i64: 4, 32, 24>}, {pipeline_mode = #tpu.pipeline_mode<synchronous>, transform_indices = @transform_2, window_bounds = array<i64: 4, 8, 32>}, {pipeline_mode = #tpu.pipeline_mode<synchronous>, transform_indices = @transform_3, window_bounds = array<i64: 1, 32>}, {pipeline_mode = #tpu.pipeline_mode<synchronous>, transform_indices = @transform_4, window_bounds = array<i64: 16, 32>}]} {
    %c0 = arith.constant 0 : index
    %c0_0 = arith.constant 0 : index
    %0 = vector.load %arg1[%c0, %c0_0] : memref<16x32xf32, #tpu.memory_space<vmem>>, vector<16x32xf32>
    %1 = vector.shape_cast %0 : vector<16x32xf32> to vector<1x16x32xf32>
    %2 = vector.shape_cast %1 : vector<1x16x32xf32> to vector<1x16x32xf32>
    %3 = vector.broadcast %2 : vector<1x16x32xf32> to vector<4x16x32xf32>
    %c0_1 = arith.constant 0 : index
    %c0_2 = arith.constant 0 : index
    %c0_3 = arith.constant 0 : index
    %4 = vector.load %arg2[%c0_1, %c0_2, %c0_3] : memref<4x32x24xf32, #tpu.memory_space<vmem>>, vector<4x32x24xf32>
    "tpu.trace_start"() <{level = 10 : i32, message = "hnc,hcd->hnd"}> : () -> ()
    %cst = arith.constant dense<0.000000e+00> : vector<4x16x24xf32>
    %5 = tpu.matmul %3, %4, %cst {dimension_numbers = #tpu.dot_dimension_numbers<[2], [1], [1], [2], [0, 0, 0, 1, 1, 2], [0], [0]>} : vector<4x16x32xf32>, vector<4x32x24xf32>, vector<4x16x24xf32> -> vector<4x16x24xf32>
    "tpu.trace_stop"() : () -> ()
    %6 = vector.extract_strided_slice %5 {offsets = [0, 0, 0], sizes = [4, 16, 8], strides = [1, 1, 1]} : vector<4x16x24xf32> to vector<4x16x8xf32>
    %7 = vector.shape_cast %6 : vector<4x16x8xf32> to vector<8x8x8xf32>
    %8 = vector.extract_strided_slice %5 {offsets = [0, 0, 8], sizes = [4, 16, 8], strides = [1, 1, 1]} : vector<4x16x24xf32> to vector<4x16x8xf32>
    %9 = vector.shape_cast %8 : vector<4x16x8xf32> to vector<8x8x8xf32>
    %10 = vector.extract_strided_slice %5 {offsets = [0, 0, 16], sizes = [4, 16, 8], strides = [1, 1, 1]} : vector<4x16x24xf32> to vector<4x16x8xf32>
    %11 = vector.shape_cast %10 : vector<4x16x8xf32> to vector<8x8x8xf32>
    %12 = tpu.iota {dimensions = array<i32: 0>} : vector<8x8xi32>
    %13 = tpu.iota {dimensions = array<i32: 1>} : vector<8x8xi32>
    %14 = arith.cmpi sle, %13, %12 : vector<8x8xi32>
    %15 = vector.shape_cast %14 : vector<8x8xi1> to vector<1x8x8xi1>
    "tpu.trace_start"() <{level = 10 : i32, message = "gqd,gkd->gqk"}> : () -> ()
    %cst_4 = arith.constant dense<0.000000e+00> : vector<8x8x8xf32>
    %16 = tpu.matmul %7, %9, %cst_4 {dimension_numbers = #tpu.dot_dimension_numbers<[2], [2], [1], [1], [0, 0, 0, 1, 1, 1], [0], [0]>} : vector<8x8x8xf32>, vector<8x8x8xf32>, vector<8x8x8xf32> -> vector<8x8x8xf32>
    %cst_5 = arith.constant -1.000000e+30 : f32
    "tpu.trace_stop"() : () -> ()
    %17 = vector.shape_cast %15 : vector<1x8x8xi1> to vector<1x8x8xi1>
    %18 = vector.broadcast %17 : vector<1x8x8xi1> to vector<8x8x8xi1>
    %19 = vector.broadcast %cst_5 : f32 to vector<8x8x8xf32>
    %20 = arith.select %18, %16, %19 : vector<8x8x8xi1>, vector<8x8x8xf32>
    %cst_6 = arith.constant dense<0xFF800000> : vector<8x8xf32>
    %21 = vector.multi_reduction <maximumf>, %20, %cst_6 [2] : vector<8x8x8xf32> to vector<8x8xf32>
    %22 = vector.shape_cast %21 : vector<8x8xf32> to vector<8x8x1xf32>
    %23 = vector.broadcast %22 : vector<8x8x1xf32> to vector<8x8x8xf32>
    %24 = arith.subf %20, %23 : vector<8x8x8xf32>
    %25 = math.exp %24 : vector<8x8x8xf32>
    %cst_7 = arith.constant dense<0.000000e+00> : vector<8x8xf32>
    %26 = vector.multi_reduction <add>, %25, %cst_7 [2] : vector<8x8x8xf32> to vector<8x8xf32>
    %27 = vector.shape_cast %26 : vector<8x8xf32> to vector<8x8x1xf32>
    %28 = tpu.reciprocal %27 : vector<8x8x1xf32> -> vector<8x8x1xf32>
    %29 = vector.broadcast %28 : vector<8x8x1xf32> to vector<8x8x8xf32>
    %30 = arith.mulf %25, %29 : vector<8x8x8xf32>
    "tpu.trace_start"() <{level = 10 : i32, message = "gqk,gkd->gqd"}> : () -> ()
    %cst_8 = arith.constant dense<0.000000e+00> : vector<8x8x8xf32>
    %31 = tpu.matmul %30, %11, %cst_8 {dimension_numbers = #tpu.dot_dimension_numbers<[2], [1], [1], [2], [0, 0, 0, 1, 1, 2], [0], [0]>} : vector<8x8x8xf32>, vector<8x8x8xf32>, vector<8x8x8xf32> -> vector<8x8x8xf32>
    "tpu.trace_stop"() : () -> ()
    %32 = vector.shape_cast %31 : vector<8x8x8xf32> to vector<4x16x8xf32>
    %c0_9 = arith.constant 0 : index
    %c0_10 = arith.constant 0 : index
    %c0_11 = arith.constant 0 : index
    %33 = vector.load %arg3[%c0_9, %c0_10, %c0_11] : memref<4x8x32xf32, #tpu.memory_space<vmem>>, vector<4x8x32xf32>
    "tpu.trace_start"() <{level = 10 : i32, message = "hnd,hdc->hnc"}> : () -> ()
    %cst_12 = arith.constant dense<0.000000e+00> : vector<4x16x32xf32>
    %34 = tpu.matmul %32, %33, %cst_12 {dimension_numbers = #tpu.dot_dimension_numbers<[2], [1], [1], [2], [0, 0, 0, 1, 1, 2], [0], [0]>} : vector<4x16x8xf32>, vector<4x8x32xf32>, vector<4x16x32xf32> -> vector<4x16x32xf32>
    "tpu.trace_stop"() : () -> ()
    %cst_13 = arith.constant dense<0.000000e+00> : vector<16x32xf32>
    %35 = vector.multi_reduction <add>, %34, %cst_13 [0] : vector<4x16x32xf32> to vector<16x32xf32>
    %c0_14 = arith.constant 0 : index
    %c0_15 = arith.constant 0 : index
    %36 = vector.load %arg4[%c0_14, %c0_15] : memref<1x32xf32, #tpu.memory_space<vmem>>, vector<1x32xf32>
    %37 = vector.broadcast %36 : vector<1x32xf32> to vector<16x32xf32>
    %38 = arith.addf %35, %37 : vector<16x32xf32>
    %c0_16 = arith.constant 0 : index
    %c0_17 = arith.constant 0 : index
    %39 = vector.load %arg5[%c0_16, %c0_17] : memref<16x32xf32, #tpu.memory_space<vmem>>, vector<16x32xf32>
    tpu.vector_store %arg5[%c0_16, %c0_17], %38 {strides = array<i32>} : memref<16x32xf32, #tpu.memory_space<vmem>>, vector<16x32xf32>,
    return
  }
  func.func @transform_0(%arg0: i32) -> (i32, i32) {
    %c0_i32 = arith.constant 0 : i32
    %c0_i32_0 = arith.constant 0 : i32
    %c0_i32_1 = arith.constant 0 : i32
    return %c0_i32, %c0_i32_0 : i32, i32
  }
  func.func @transform_1(%arg0: i32) -> (i32, i32, i32) {
    %c0_i32 = arith.constant 0 : i32
    %c0_i32_0 = arith.constant 0 : i32
    %c0_i32_1 = arith.constant 0 : i32
    %c0_i32_2 = arith.constant 0 : i32
    return %c0_i32, %c0_i32_0, %c0_i32_1 : i32, i32, i32
  }
  func.func @transform_2(%arg0: i32) -> (i32, i32, i32) {
    %c0_i32 = arith.constant 0 : i32
    %c0_i32_0 = arith.constant 0 : i32
    %c0_i32_1 = arith.constant 0 : i32
    %c0_i32_2 = arith.constant 0 : i32
    return %c0_i32, %c0_i32_0, %c0_i32_1 : i32, i32, i32
  }
  func.func @transform_3(%arg0: i32) -> (i32, i32) {
    %c0_i32 = arith.constant 0 : i32
    %c0_i32_0 = arith.constant 0 : i32
    %c0_i32_1 = arith.constant 0 : i32
    return %c0_i32, %c0_i32_0 : i32, i32
  }
  func.func @transform_4(%arg0: i32) -> (i32, i32) {
    %c0_i32 = arith.constant 0 : i32
    %c0_i32_0 = arith.constant 0 : i32
    %c0_i32_1 = arith.constant 0 : i32
    return %c0_i32, %c0_i32_0 : i32, i32
  }
}

</mosaic_0001>

<llo_original>
// kernel: tpu_custom_call.1
$region0: #{tpu_custom_call.1}
  #allocation0 [shape = 'u32[]', space=smem, size = 0x4, offset = 0x4, fixed_abs, tag = 'smem constant byte address 0x4 - core index']
  #allocation1 [shape = 'u32[144,128]{1,0:T(1,128)}', space=vmem, size = 0x12000, scoped, tag = 'internal scratch']
  %s0 = inlined_call_operand.vmem [shape: f32[16,32], index: 0, kind: input, shape index: {}]
  %s1 = inlined_call_operand.vmem [shape: f32[4,32,24], index: 1, kind: input, shape index: {}]
  %s2 = inlined_call_operand.vmem [shape: f32[4,8,32], index: 2, kind: input, shape index: {}]
  %s3 = inlined_call_operand.vmem [shape: f32[1,32], index: 3, kind: input, shape index: {}]
  %s4 = inlined_call_operand.hbm [shape: f32[16,32], index: 4, kind: output, shape index: {}]
  %s5 = sld [smem:[#allocation0]]
  $region26: #{tpu_custom_call.1} parent=0
    _
  %s7 = ssub.s32 1, %s5
  %s8 = scalar_select 0, %s7, %s5
  $region1: #{tpu_custom_call.1} parent=0
    #allocation2 [shape = 'u8[8192]{0}', space=vmem, size = 0x2000, scoped, tag = 'output window, operand 0, single buffered']
    #allocation3 [shape = 's32[1]{0}', space=sflag, size = 0x4, scoped, tag = 'scoped memory for tpu_custom_call.1']
    %9 = vsyncpa [#allocation3], 0
    // Predicated region
    $region2: #{tpu_custom_call.1} parent=1 // pred_check
      _
    $region3: #{tpu_custom_call.1} parent=1 // pred_check_branch
      %11 = sbr.rel (0) target = $region5
    $region4: #{tpu_custom_call.1} parent=1 // pred_region
      _
    $region5: #{tpu_custom_call.1} parent=1 // pred_fallthru
      _
    // Predicated region
    $region6: #{tpu_custom_call.1} parent=1 // pred_check
      _
    $region7: #{tpu_custom_call.1} parent=1 // pred_check_branch
      %13 = sbr.rel (0) target = $region9
    $region8: #{tpu_custom_call.1} parent=1 // pred_region
      _
    $region9: #{tpu_custom_call.1} parent=1 // pred_fallthru
      _
    // Predicated region
    $region10: #{tpu_custom_call.1} parent=1 // pred_check
      _
    $region11: #{tpu_custom_call.1} parent=1 // pred_check_branch
      %15 = sbr.rel (0) target = $region13
    $region12: #{tpu_custom_call.1} parent=1 // pred_region
      _
    $region13: #{tpu_custom_call.1} parent=1 // pred_fallthru
      _
    // Predicated region
    $region14: #{tpu_custom_call.1} parent=1 // pred_check
      _
    $region15: #{tpu_custom_call.1} parent=1 // pred_check_branch
      %17 = sbr.rel (0) target = $region17
    $region16: #{tpu_custom_call.1} parent=1 // pred_region
      _
    $region17: #{tpu_custom_call.1} parent=1 // pred_fallthru
      _
    %v18 = vld [vmem:[%s0] sm:$0xff]
    %v19 = vld [vmem:[%s0 + $0x8] sm:$0xff]
    %v20 = vld [vmem:[%s1] sm:$0xff]
    %v21 = vld [vmem:[%s1 + $0x8] sm:$0xff]
    %v22 = vld [vmem:[%s1 + $0x10] sm:$0xff]
    %v23 = vld [vmem:[%s1 + $0x18] sm:$0xff]
    %v24 = vld [vmem:[%s1 + $0x20] sm:$0xff]
    %v25 = vld [vmem:[%s1 + $0x28] sm:$0xff]
    %v26 = vld [vmem:[%s1 + $0x30] sm:$0xff]
    %v27 = vld [vmem:[%s1 + $0x38] sm:$0xff]
    %v28 = vld [vmem:[%s1 + $0x40] sm:$0xff]
    %v29 = vld [vmem:[%s1 + $0x48] sm:$0xff]
    %v30 = vld [vmem:[%s1 + $0x50] sm:$0xff]
    %v31 = vld [vmem:[%s1 + $0x58] sm:$0xff]
    %v32 = vld [vmem:[%s1 + $0x60] sm:$0xff]
    %v33 = vld [vmem:[%s1 + $0x68] sm:$0xff]
    %v34 = vld [vmem:[%s1 + $0x70] sm:$0xff]
    %v35 = vld [vmem:[%s1 + $0x78] sm:$0xff]
    %vm36 = vcmask 261120
    %v38 = vsel %vm36, %v18, 0
    %v41 = vsel %vm36, %v19, 0
    %43 = vmatprep.subr.mxu0 0.0
    %44 = vmatpush1.msra.mxu0 %v20
    %45 = vmatprep.subr.mxu0 0.0
    %46 = vmatpush1.msra.mxu0 %v21
    %47 = vmatprep.subr.mxu0 0.0
    %48 = vmatpush1.msra.mxu0 %v22
    %49 = vmatprep.subr.mxu0 0.0
    %50 = vmatpush1.msra.mxu0 %v23
    %51 = vmatprep.subr.mxu0 0.0
    %52 = vmatpush1.msra.mxu0 0.0
    %53 = vmatprep.subr.mxu0 0.0
    %54 = vmatpush1.msra.mxu0 0.0
    %55 = vmatprep.subr.mxu0 0.0
    %56 = vmatpush1.msra.mxu0 0.0
    %57 = vmatprep.subr.mxu0 0.0
    %58 = vmatpush1.msra.mxu0 0.0
    %59 = vmatprep.subr.mxu0 0.0
    %60 = vmatpush1.msra.mxu0 0.0
    %61 = vmatprep.subr.mxu0 0.0
    %62 = vmatpush1.msra.mxu0 0.0
    %63 = vmatprep.subr.mxu0 0.0
    %64 = vmatpush1.msra.mxu0 0.0
    %65 = vmatprep.subr.mxu0 0.0
    %66 = vmatpush1.msra.mxu0 0.0
    %67 = vmatprep.subr.mxu0 0.0
    %68 = vmatpush1.msra.mxu0 0.0
    %69 = vmatprep.subr.mxu0 0.0
    %70 = vmatpush1.msra.mxu0 0.0
    %71 = vmatprep.subr.mxu0 0.0
    %72 = vmatpush1.msra.mxu0 0.0
    %73 = vmatprep.subr.mxu0 0.0
    %74 = vmatpush1.msra.mxu0 0.0
    %75 = vmatprep.subr.mxu0 0.0
    %76 = vmatpush1.msra.mxu0 0.0
    %77 = vmatprep.subr.mxu0 0.0
    %78 = vmatpush1.msra.mxu0 0.0
    %79 = vmatprep.subr.mxu0 0.0
    %80 = vmatpush1.msra.mxu0 0.0
    %81 = vmatprep.subr.mxu0 0.0
    %82 = vmatpush1.msra.mxu0 0.0
    %83 = vmatprep.subr.mxu0 0.0
    %84 = vmatpush1.msra.mxu0 0.0
    %85 = vmatprep.subr.mxu0 0.0
    %86 = vmatpush1.msra.mxu0 0.0
    %87 = vmatprep.subr.mxu0 0.0
    %88 = vmatpush1.msra.mxu0 0.0
    %89 = vmatprep.subr.mxu0 0.0
    %90 = vmatpush1.msra.mxu0 0.0
    %91 = vmatprep.subr.mxu0 0.0
    %92 = vmatpush1.msra.mxu0 0.0
    %93 = vmatprep.subr.mxu0 0.0
    %94 = vmatpush1.msra.mxu0 0.0
    %95 = vmatprep.subr.mxu0 0.0
    %96 = vmatpush1.msra.mxu0 0.0
    %97 = vmatprep.subr.mxu0 0.0
    %98 = vmatpush1.msra.mxu0 0.0
    %99 = vmatprep.subr.mxu0 0.0
    %100 = vmatpush1.msra.mxu0 0.0
    %101 = vmatprep.subr.mxu0 0.0
    %102 = vmatpush1.msra.mxu0 0.0
    %103 = vmatprep.subr.mxu0 0.0
    %104 = vmatpush1.msra.mxu0 0.0
    %105 = vmatprep.subr.mxu0 0.0
    %106 = vmatpush1.msra.mxu0 0.0
    %107 = vmatprep.mubr.f32.mxu0 0.0
    %108 = vmatmul.mubr.f32.gmra.mrb[0].mxu0 %v38
    %v109 = vpop.f32.mrb[0].mxu0
    %v110 = vadd.f32 0.0, %v109
    %v111 = vpop.f32.mrb[0].mxu0
    %112 = vmatprep.mubr.f32.mxu0 0.0
    %113 = vmatmul.mubr.f32.gmra.mrb[0].mxu0 %v41
    %v114 = vpop.f32.mrb[0].mxu0
    %v115 = vadd.f32 0.0, %v114
    %v116 = vpop.f32.mrb[0].mxu0
    %117 = vdwg.mxu0
    %118 = vmatprep.subr.mxu0 0.0
    %119 = vmatpush1.msra.mxu0 %v24
    %120 = vmatprep.subr.mxu0 0.0
    %121 = vmatpush1.msra.mxu0 %v25
    %122 = vmatprep.subr.mxu0 0.0
    %123 = vmatpush1.msra.mxu0 %v26
    %124 = vmatprep.subr.mxu0 0.0
    %125 = vmatpush1.msra.mxu0 %v27
    %126 = vmatprep.subr.mxu0 0.0
    %127 = vmatpush1.msra.mxu0 0.0
    %128 = vmatprep.subr.mxu0 0.0
    %129 = vmatpush1.msra.mxu0 0.0
    %130 = vmatprep.subr.mxu0 0.0
    %131 = vmatpush1.msra.mxu0 0.0
    %132 = vmatprep.subr.mxu0 0.0
    %133 = vmatpush1.msra.mxu0 0.0
    %134 = vmatprep.subr.mxu0 0.0
    %135 = vmatpush1.msra.mxu0 0.0
    %136 = vmatprep.subr.mxu0 0.0
    %137 = vmatpush1.msra.mxu0 0.0
    %138 = vmatprep.subr.mxu0 0.0
    %139 = vmatpush1.msra.mxu0 0.0
    %140 = vmatprep.subr.mxu0 0.0
    %141 = vmatpush1.msra.mxu0 0.0
    %142 = vmatprep.subr.mxu0 0.0
    %143 = vmatpush1.msra.mxu0 0.0
    %144 = vmatprep.subr.mxu0 0.0
    %145 = vmatpush1.msra.mxu0 0.0
    %146 = vmatprep.subr.mxu0 0.0
    %147 = vmatpush1.msra.mxu0 0.0
    %148 = vmatprep.subr.mxu0 0.0
    %149 = vmatpush1.msra.mxu0 0.0
    %150 = vmatprep.subr.mxu0 0.0
    %151 = vmatpush1.msra.mxu0 0.0
    %152 = vmatprep.subr.mxu0 0.0
    %153 = vmatpush1.msra.mxu0 0.0
    %154 = vmatprep.subr.mxu0 0.0
    %155 = vmatpush1.msra.mxu0 0.0
    %156 = vmatprep.subr.mxu0 0.0
    %157 = vmatpush1.msra.mxu0 0.0
    %158 = vmatprep.subr.mxu0 0.0
    %159 = vmatpush1.msra.mxu0 0.0
    %160 = vmatprep.subr.mxu0 0.0
    %161 = vmatpush1.msra.mxu0 0.0
    %162 = vmatprep.subr.mxu0 0.0
    %163 = vmatpush1.msra.mxu0 0.0
    %164 = vmatprep.subr.mxu0 0.0
    %165 = vmatpush1.msra.mxu0 0.0
    %166 = vmatprep.subr.mxu0 0.0
    %167 = vmatpush1.msra.mxu0 0.0
    %168 = vmatprep.subr.mxu0 0.0
    %169 = vmatpush1.msra.mxu0 0.0
    %170 = vmatprep.subr.mxu0 0.0
    %171 = vmatpush1.msra.mxu0 0.0
    %172 = vmatprep.subr.mxu0 0.0
    %173 = vmatpush1.msra.mxu0 0.0
    %174 = vmatprep.subr.mxu0 0.0
    %175 = vmatpush1.msra.mxu0 0.0
    %176 = vmatprep.subr.mxu0 0.0
    %177 = vmatpush1.msra.mxu0 0.0
    %178 = vmatprep.subr.mxu0 0.0
    %179 = vmatpush1.msra.mxu0 0.0
    %180 = vmatprep.subr.mxu0 0.0
    %181 = vmatpush1.msra.mxu0 0.0
    %182 = vmatprep.mubr.f32.mxu0 0.0
    %183 = vmatmul.mubr.f32.gmra.mrb[0].mxu0 %v38
    %v184 = vpop.f32.mrb[0].mxu0
    %v185 = vadd.f32 0.0, %v184
    %v186 = vpop.f32.mrb[0].mxu0
    %187 = vmatprep.mubr.f32.mxu0 0.0
    %188 = vmatmul.mubr.f32.gmra.mrb[0].mxu0 %v41
    %v189 = vpop.f32.mrb[0].mxu0
    %v190 = vadd.f32 0.0, %v189
    %v191 = vpop.f32.mrb[0].mxu0
    %192 = vdwg.mxu0
    %193 = vmatprep.subr.mxu0 0.0
    %194 = vmatpush1.msra.mxu0 %v28
    %195 = vmatprep.subr.mxu0 0.0
    %196 = vmatpush1.msra.mxu0 %v29
    %197 = vmatprep.subr.mxu0 0.0
    %198 = vmatpush1.msra.mxu0 %v30
    %199 = vmatprep.subr.mxu0 0.0
    %200 = vmatpush1.msra.mxu0 %v31
    %201 = vmatprep.subr.mxu0 0.0
    %202 = vmatpush1.msra.mxu0 0.0
    %203 = vmatprep.subr.mxu0 0.0
    %204 = vmatpush1.msra.mxu0 0.0
    %205 = vmatprep.subr.mxu0 0.0
    %206 = vmatpush1.msra.mxu0 0.0
    %207 = vmatprep.subr.mxu0 0.0
    %208 = vmatpush1.msra.mxu0 0.0
    %209 = vmatprep.subr.mxu0 0.0
    %210 = vmatpush1.msra.mxu0 0.0
    %211 = vmatprep.subr.mxu0 0.0
    %212 = vmatpush1.msra.mxu0 0.0
    %213 = vmatprep.subr.mxu0 0.0
    %214 = vmatpush1.msra.mxu0 0.0
    %215 = vmatprep.subr.mxu0 0.0
    %216 = vmatpush1.msra.mxu0 0.0
    %217 = vmatprep.subr.mxu0 0.0
    %218 = vmatpush1.msra.mxu0 0.0
    %219 = vmatprep.subr.mxu0 0.0
    %220 = vmatpush1.msra.mxu0 0.0
    %221 = vmatprep.subr.mxu0 0.0
    %222 = vmatpush1.msra.mxu0 0.0
    %223 = vmatprep.subr.mxu0 0.0
    %224 = vmatpush1.msra.mxu0 0.0
    %225 = vmatprep.subr.mxu0 0.0
    %226 = vmatpush1.msra.mxu0 0.0
    %227 = vmatprep.subr.mxu0 0.0
    %228 = vmatpush1.msra.mxu0 0.0
    %229 = vmatprep.subr.mxu0 0.0
    %230 = vmatpush1.msra.mxu0 0.0
    %231 = vmatprep.subr.mxu0 0.0
    %232 = vmatpush1.msra.mxu0 0.0
    %233 = vmatprep.subr.mxu0 0.0
    %234 = vmatpush1.msra.mxu0 0.0
    %235 = vmatprep.subr.mxu0 0.0
    %236 = vmatpush1.msra.mxu0 0.0
    %237 = vmatprep.subr.mxu0 0.0
    %238 = vmatpush1.msra.mxu0 0.0
    %239 = vmatprep.subr.mxu0 0.0
    %240 = vmatpush1.msra.mxu0 0.0
    %241 = vmatprep.subr.mxu0 0.0
    %242 = vmatpush1.msra.mxu0 0.0
    %243 = vmatprep.subr.mxu0 0.0
    %244 = vmatpush1.msra.mxu0 0.0
    %245 = vmatprep.subr.mxu0 0.0
    %246 = vmatpush1.msra.mxu0 0.0
    %247 = vmatprep.subr.mxu0 0.0
    %248 = vmatpush1.msra.mxu0 0.0
    %249 = vmatprep.subr.mxu0 0.0
    %250 = vmatpush1.msra.mxu0 0.0
    %251 = vmatprep.subr.mxu0 0.0
    %252 = vmatpush1.msra.mxu0 0.0
    %253 = vmatprep.subr.mxu0 0.0
    %254 = vmatpush1.msra.mxu0 0.0
    %255 = vmatprep.subr.mxu0 0.0
    %256 = vmatpush1.msra.mxu0 0.0
    %257 = vmatprep.mubr.f32.mxu0 0.0
    %258 = vmatmul.mubr.f32.gmra.mrb[0].mxu0 %v38
    %v259 = vpop.f32.mrb[0].mxu0
    %v260 = vadd.f32 0.0, %v259
    %v261 = vpop.f32.mrb[0].mxu0
    %262 = vmatprep.mubr.f32.mxu0 0.0
    %263 = vmatmul.mubr.f32.gmra.mrb[0].mxu0 %v41
    %v264 = vpop.f32.mrb[0].mxu0
    %v265 = vadd.f32 0.0, %v264
    %v266 = vpop.f32.mrb[0].mxu0
    %267 = vdwg.mxu0
    %268 = vmatprep.subr.mxu0 0.0
    %269 = vmatpush1.msra.mxu0 %v32
    %270 = vmatprep.subr.mxu0 0.0
    %271 = vmatpush1.msra.mxu0 %v33
    %272 = vmatprep.subr.mxu0 0.0
    %273 = vmatpush1.msra.mxu0 %v34
    %274 = vmatprep.subr.mxu0 0.0
    %275 = vmatpush1.msra.mxu0 %v35
    %276 = vmatprep.subr.mxu0 0.0
    %277 = vmatpush1.msra.mxu0 0.0
    %278 = vmatprep.subr.mxu0 0.0
    %279 = vmatpush1.msra.mxu0 0.0
    %280 = vmatprep.subr.mxu0 0.0
    %281 = vmatpush1.msra.mxu0 0.0
    %282 = vmatprep.subr.mxu0 0.0
    %283 = vmatpush1.msra.mxu0 0.0
    %284 = vmatprep.subr.mxu0 0.0
    %285 = vmatpush1.msra.mxu0 0.0
    %286 = vmatprep.subr.mxu0 0.0
    %287 = vmatpush1.msra.mxu0 0.0
    %288 = vmatprep.subr.mxu0 0.0
    %289 = vmatpush1.msra.mxu0 0.0
    %290 = vmatprep.subr.mxu0 0.0
    %291 = vmatpush1.msra.mxu0 0.0
    %292 = vmatprep.subr.mxu0 0.0
    %293 = vmatpush1.msra.mxu0 0.0
    %294 = vmatprep.subr.mxu0 0.0
    %295 = vmatpush1.msra.mxu0 0.0
    %296 = vmatprep.subr.mxu0 0.0
    %297 = vmatpush1.msra.mxu0 0.0
    %298 = vmatprep.subr.mxu0 0.0
    %299 = vmatpush1.msra.mxu0 0.0
    %300 = vmatprep.subr.mxu0 0.0
    %301 = vmatpush1.msra.mxu0 0.0
    %302 = vmatprep.subr.mxu0 0.0
    %303 = vmatpush1.msra.mxu0 0.0
    %304 = vmatprep.subr.mxu0 0.0
    %305 = vmatpush1.msra.mxu0 0.0
    %306 = vmatprep.subr.mxu0 0.0
    %307 = vmatpush1.msra.mxu0 0.0
    %308 = vmatprep.subr.mxu0 0.0
    %309 = vmatpush1.msra.mxu0 0.0
    %310 = vmatprep.subr.mxu0 0.0
    %311 = vmatpush1.msra.mxu0 0.0
    %312 = vmatprep.subr.mxu0 0.0
    %313 = vmatpush1.msra.mxu0 0.0
    %314 = vmatprep.subr.mxu0 0.0
    %315 = vmatpush1.msra.mxu0 0.0
    %316 = vmatprep.subr.mxu0 0.0
    %317 = vmatpush1.msra.mxu0 0.0
    %318 = vmatprep.subr.mxu0 0.0
    %319 = vmatpush1.msra.mxu0 0.0
    %320 = vmatprep.subr.mxu0 0.0
    %321 = vmatpush1.msra.mxu0 0.0
    %322 = vmatprep.subr.mxu0 0.0
    %323 = vmatpush1.msra.mxu0 0.0
    %324 = vmatprep.subr.mxu0 0.0
    %325 = vmatpush1.msra.mxu0 0.0
    %326 = vmatprep.subr.mxu0 0.0
    %327 = vmatpush1.msra.mxu0 0.0
    %328 = vmatprep.subr.mxu0 0.0
    %329 = vmatpush1.msra.mxu0 0.0
    %330 = vmatprep.subr.mxu0 0.0
    %331 = vmatpush1.msra.mxu0 0.0
    %332 = vmatprep.mubr.f32.mxu0 0.0
    %333 = vmatmul.mubr.f32.gmra.mrb[0].mxu0 %v38
    %v334 = vpop.f32.mrb[0].mxu0
    %v335 = vadd.f32 0.0, %v334
    %v336 = vpop.f32.mrb[0].mxu0
    %337 = vmatprep.mubr.f32.mxu0 0.0
    %338 = vmatmul.mubr.f32.gmra.mrb[0].mxu0 %v41
    %v339 = vpop.f32.mrb[0].mxu0
    %v340 = vadd.f32 0.0, %v339
    %v341 = vpop.f32.mrb[0].mxu0
    %342 = vdwg.mxu0
    %v343 = vlaneseq
    %v344 = vshrl.u32 %v343, 7
    %v345 = vlaneseq
    %v346 = vand.u32 %v345, 127
    %vm347 = vcmp.le.s32.totalorder %v346, %v344
    %349 = vrot.lane.b32.xlu0 %v110, 120
    %v350 = vpop.permute.xlu0 %349
    %vm351 = vcmask 64512
    %v352 = vsel %vm351, %v110, 0
    %v354 = vsel %vm351, %v350, 0
    %356 = vmatprep.subr.mxu0 0.0
    %357 = vmatpush1.xpose.msra.mxu0 %v354
    %358 = vmatprep.subr.mxu0 0.0
    %359 = vmatpush1.xpose.msra.mxu0 0.0
    %360 = vmatprep.subr.mxu0 0.0
    %361 = vmatpush1.xpose.msra.mxu0 0.0
    %362 = vmatprep.subr.mxu0 0.0
    %363 = vmatpush1.xpose.msra.mxu0 0.0
    %364 = vmatprep.subr.mxu0 0.0
    %365 = vmatpush1.xpose.msra.mxu0 0.0
    %366 = vmatprep.subr.mxu0 0.0
    %367 = vmatpush1.xpose.msra.mxu0 0.0
    %368 = vmatprep.subr.mxu0 0.0
    %369 = vmatpush1.xpose.msra.mxu0 0.0
    %370 = vmatprep.subr.mxu0 0.0
    %371 = vmatpush1.xpose.msra.mxu0 0.0
    %372 = vmatprep.subr.mxu0 0.0
    %373 = vmatpush1.xpose.msra.mxu0 0.0
    %374 = vmatprep.subr.mxu0 0.0
    %375 = vmatpush1.xpose.msra.mxu0 0.0
    %376 = vmatprep.subr.mxu0 0.0
    %377 = vmatpush1.xpose.msra.mxu0 0.0
    %378 = vmatprep.subr.mxu0 0.0
    %379 = vmatpush1.xpose.msra.mxu0 0.0
    %380 = vmatprep.subr.mxu0 0.0
    %381 = vmatpush1.xpose.msra.mxu0 0.0
    %382 = vmatprep.subr.mxu0 0.0
    %383 = vmatpush1.xpose.msra.mxu0 0.0
    %384 = vmatprep.subr.mxu0 0.0
    %385 = vmatpush1.xpose.msra.mxu0 0.0
    %386 = vmatprep.subr.mxu0 0.0
    %387 = vmatpush1.xpose.msra.mxu0 0.0
    %388 = vmatprep.subr.mxu0 0.0
    %389 = vmatpush1.xpose.msra.mxu0 0.0
    %390 = vmatprep.subr.mxu0 0.0
    %391 = vmatpush1.xpose.msra.mxu0 0.0
    %392 = vmatprep.subr.mxu0 0.0
    %393 = vmatpush1.xpose.msra.mxu0 0.0
    %394 = vmatprep.subr.mxu0 0.0
    %395 = vmatpush1.xpose.msra.mxu0 0.0
    %396 = vmatprep.subr.mxu0 0.0
    %397 = vmatpush1.xpose.msra.mxu0 0.0
    %398 = vmatprep.subr.mxu0 0.0
    %399 = vmatpush1.xpose.msra.mxu0 0.0
    %400 = vmatprep.subr.mxu0 0.0
    %401 = vmatpush1.xpose.msra.mxu0 0.0
    %402 = vmatprep.subr.mxu0 0.0
    %403 = vmatpush1.xpose.msra.mxu0 0.0
    %404 = vmatprep.subr.mxu0 0.0
    %405 = vmatpush1.xpose.msra.mxu0 0.0
    %406 = vmatprep.subr.mxu0 0.0
    %407 = vmatpush1.xpose.msra.mxu0 0.0
    %408 = vmatprep.subr.mxu0 0.0
    %409 = vmatpush1.xpose.msra.mxu0 0.0
    %410 = vmatprep.subr.mxu0 0.0
    %411 = vmatpush1.xpose.msra.mxu0 0.0
    %412 = vmatprep.subr.mxu0 0.0
    %413 = vmatpush1.xpose.msra.mxu0 0.0
    %414 = vmatprep.subr.mxu0 0.0
    %415 = vmatpush1.xpose.msra.mxu0 0.0
    %416 = vmatprep.subr.mxu0 0.0
    %417 = vmatpush1.xpose.msra.mxu0 0.0
    %418 = vmatprep.subr.mxu0 0.0
    %419 = vmatpush1.xpose.msra.mxu0 0.0
    %420 = vmatprep.mubr.f32.mxu0 0.0
    %421 = vmatmul.mubr.f32.gmra.mrb[0].mxu0 %v352
    %v422 = vpop.f32.mrb[0].mxu0
    %v423 = vadd.f32 0.0, %v422
    %v424 = vpop.f32.mrb[0].mxu0
    %425 = vdwg.mxu0
    %427 = vrot.lane.b32.xlu0 %v115, 120
    %v428 = vpop.permute.xlu0 %427
    %v429 = vsel %vm351, %v115, 0
    %v431 = vsel %vm351, %v428, 0
    %433 = vmatprep.subr.mxu0 0.0
    %434 = vmatpush1.xpose.msra.mxu0 %v431
    %435 = vmatprep.subr.mxu0 0.0
    %436 = vmatpush1.xpose.msra.mxu0 0.0
    %437 = vmatprep.subr.mxu0 0.0
    %438 = vmatpush1.xpose.msra.mxu0 0.0
    %439 = vmatprep.subr.mxu0 0.0
    %440 = vmatpush1.xpose.msra.mxu0 0.0
    %441 = vmatprep.subr.mxu0 0.0
    %442 = vmatpush1.xpose.msra.mxu0 0.0
    %443 = vmatprep.subr.mxu0 0.0
    %444 = vmatpush1.xpose.msra.mxu0 0.0
    %445 = vmatprep.subr.mxu0 0.0
    %446 = vmatpush1.xpose.msra.mxu0 0.0
    %447 = vmatprep.subr.mxu0 0.0
    %448 = vmatpush1.xpose.msra.mxu0 0.0
    %449 = vmatprep.subr.mxu0 0.0
    %450 = vmatpush1.xpose.msra.mxu0 0.0
    %451 = vmatprep.subr.mxu0 0.0
    %452 = vmatpush1.xpose.msra.mxu0 0.0
    %453 = vmatprep.subr.mxu0 0.0
    %454 = vmatpush1.xpose.msra.mxu0 0.0
    %455 = vmatprep.subr.mxu0 0.0
    %456 = vmatpush1.xpose.msra.mxu0 0.0
    %457 = vmatprep.subr.mxu0 0.0
    %458 = vmatpush1.xpose.msra.mxu0 0.0
    %459 = vmatprep.subr.mxu0 0.0
    %460 = vmatpush1.xpose.msra.mxu0 0.0
    %461 = vmatprep.subr.mxu0 0.0
    %462 = vmatpush1.xpose.msra.mxu0 0.0
    %463 = vmatprep.subr.mxu0 0.0
    %464 = vmatpush1.xpose.msra.mxu0 0.0
    %465 = vmatprep.subr.mxu0 0.0
    %466 = vmatpush1.xpose.msra.mxu0 0.0
    %467 = vmatprep.subr.mxu0 0.0
    %468 = vmatpush1.xpose.msra.mxu0 0.0
    %469 = vmatprep.subr.mxu0 0.0
    %470 = vmatpush1.xpose.msra.mxu0 0.0
    %471 = vmatprep.subr.mxu0 0.0
    %472 = vmatpush1.xpose.msra.mxu0 0.0
    %473 = vmatprep.subr.mxu0 0.0
    %474 = vmatpush1.xpose.msra.mxu0 0.0
    %475 = vmatprep.subr.mxu0 0.0
    %476 = vmatpush1.xpose.msra.mxu0 0.0
    %477 = vmatprep.subr.mxu0 0.0
    %478 = vmatpush1.xpose.msra.mxu0 0.0
    %479 = vmatprep.subr.mxu0 0.0
    %480 = vmatpush1.xpose.msra.mxu0 0.0
    %481 = vmatprep.subr.mxu0 0.0
    %482 = vmatpush1.xpose.msra.mxu0 0.0
    %483 = vmatprep.subr.mxu0 0.0
    %484 = vmatpush1.xpose.msra.mxu0 0.0
    %485 = vmatprep.subr.mxu0 0.0
    %486 = vmatpush1.xpose.msra.mxu0 0.0
    %487 = vmatprep.subr.mxu0 0.0
    %488 = vmatpush1.xpose.msra.mxu0 0.0
    %489 = vmatprep.subr.mxu0 0.0
    %490 = vmatpush1.xpose.msra.mxu0 0.0
    %491 = vmatprep.subr.mxu0 0.0
    %492 = vmatpush1.xpose.msra.mxu0 0.0
    %493 = vmatprep.subr.mxu0 0.0
    %494 = vmatpush1.xpose.msra.mxu0 0.0
    %495 = vmatprep.subr.mxu0 0.0
    %496 = vmatpush1.xpose.msra.mxu0 0.0
    %497 = vmatprep.mubr.f32.mxu0 0.0
    %498 = vmatmul.mubr.f32.gmra.mrb[0].mxu0 %v429
    %v499 = vpop.f32.mrb[0].mxu0
    %v500 = vadd.f32 0.0, %v499
    %v501 = vpop.f32.mrb[0].mxu0
    %502 = vdwg.mxu0
    %504 = vrot.lane.b32.xlu0 %v185, 120
    %v505 = vpop.permute.xlu0 %504
    %v506 = vsel %vm351, %v185, 0
    %v508 = vsel %vm351, %v505, 0
    %510 = vmatprep.subr.mxu0 0.0
    %511 = vmatpush1.xpose.msra.mxu0 %v508
    %512 = vmatprep.subr.mxu0 0.0
    %513 = vmatpush1.xpose.msra.mxu0 0.0
    %514 = vmatprep.subr.mxu0 0.0
    %515 = vmatpush1.xpose.msra.mxu0 0.0
    %516 = vmatprep.subr.mxu0 0.0
    %517 = vmatpush1.xpose.msra.mxu0 0.0
    %518 = vmatprep.subr.mxu0 0.0
    %519 = vmatpush1.xpose.msra.mxu0 0.0
    %520 = vmatprep.subr.mxu0 0.0
    %521 = vmatpush1.xpose.msra.mxu0 0.0
    %522 = vmatprep.subr.mxu0 0.0
    %523 = vmatpush1.xpose.msra.mxu0 0.0
    %524 = vmatprep.subr.mxu0 0.0
    %525 = vmatpush1.xpose.msra.mxu0 0.0
    %526 = vmatprep.subr.mxu0 0.0
    %527 = vmatpush1.xpose.msra.mxu0 0.0
    %528 = vmatprep.subr.mxu0 0.0
    %529 = vmatpush1.xpose.msra.mxu0 0.0
    %530 = vmatprep.subr.mxu0 0.0
    %531 = vmatpush1.xpose.msra.mxu0 0.0
    %532 = vmatprep.subr.mxu0 0.0
    %533 = vmatpush1.xpose.msra.mxu0 0.0
    %534 = vmatprep.subr.mxu0 0.0
    %535 = vmatpush1.xpose.msra.mxu0 0.0
    %536 = vmatprep.subr.mxu0 0.0
    %537 = vmatpush1.xpose.msra.mxu0 0.0
    %538 = vmatprep.subr.mxu0 0.0
    %539 = vmatpush1.xpose.msra.mxu0 0.0
    %540 = vmatprep.subr.mxu0 0.0
    %541 = vmatpush1.xpose.msra.mxu0 0.0
    %542 = vmatprep.subr.mxu0 0.0
    %543 = vmatpush1.xpose.msra.mxu0 0.0
    %544 = vmatprep.subr.mxu0 0.0
    %545 = vmatpush1.xpose.msra.mxu0 0.0
    %546 = vmatprep.subr.mxu0 0.0
    %547 = vmatpush1.xpose.msra.mxu0 0.0
    %548 = vmatprep.subr.mxu0 0.0
    %549 = vmatpush1.xpose.msra.mxu0 0.0
    %550 = vmatprep.subr.mxu0 0.0
    %551 = vmatpush1.xpose.msra.mxu0 0.0
    %552 = vmatprep.subr.mxu0 0.0
    %553 = vmatpush1.xpose.msra.mxu0 0.0
    %554 = vmatprep.subr.mxu0 0.0
    %555 = vmatpush1.xpose.msra.mxu0 0.0
    %556 = vmatprep.subr.mxu0 0.0
    %557 = vmatpush1.xpose.msra.mxu0 0.0
    %558 = vmatprep.subr.mxu0 0.0
    %559 = vmatpush1.xpose.msra.mxu0 0.0
    %560 = vmatprep.subr.mxu0 0.0
    %561 = vmatpush1.xpose.msra.mxu0 0.0
    %562 = vmatprep.subr.mxu0 0.0
    %563 = vmatpush1.xpose.msra.mxu0 0.0
    %564 = vmatprep.subr.mxu0 0.0
    %565 = vmatpush1.xpose.msra.mxu0 0.0
    %566 = vmatprep.subr.mxu0 0.0
    %567 = vmatpush1.xpose.msra.mxu0 0.0
    %568 = vmatprep.subr.mxu0 0.0
    %569 = vmatpush1.xpose.msra.mxu0 0.0
    %570 = vmatprep.subr.mxu0 0.0
    %571 = vmatpush1.xpose.msra.mxu0 0.0
    %572 = vmatprep.subr.mxu0 0.0
    %573 = vmatpush1.xpose.msra.mxu0 0.0
    %574 = vmatprep.mubr.f32.mxu0 0.0
    %575 = vmatmul.mubr.f32.gmra.mrb[0].mxu0 %v506
    %v576 = vpop.f32.mrb[0].mxu0
    %v577 = vadd.f32 0.0, %v576
    %v578 = vpop.f32.mrb[0].mxu0
    %579 = vdwg.mxu0
    %581 = vrot.lane.b32.xlu0 %v190, 120
    %v582 = vpop.permute.xlu0 %581
    %v583 = vsel %vm351, %v190, 0
    %v585 = vsel %vm351, %v582, 0
    %587 = vmatprep.subr.mxu0 0.0
    %588 = vmatpush1.xpose.msra.mxu0 %v585
    %589 = vmatprep.subr.mxu0 0.0
    %590 = vmatpush1.xpose.msra.mxu0 0.0
    %591 = vmatprep.subr.mxu0 0.0
    %592 = vmatpush1.xpose.msra.mxu0 0.0
    %593 = vmatprep.subr.mxu0 0.0
    %594 = vmatpush1.xpose.msra.mxu0 0.0
    %595 = vmatprep.subr.mxu0 0.0
    %596 = vmatpush1.xpose.msra.mxu0 0.0
    %597 = vmatprep.subr.mxu0 0.0
    %598 = vmatpush1.xpose.msra.mxu0 0.0
    %599 = vmatprep.subr.mxu0 0.0
    %600 = vmatpush1.xpose.msra.mxu0 0.0
    %601 = vmatprep.subr.mxu0 0.0
    %602 = vmatpush1.xpose.msra.mxu0 0.0
    %603 = vmatprep.subr.mxu0 0.0
    %604 = vmatpush1.xpose.msra.mxu0 0.0
    %605 = vmatprep.subr.mxu0 0.0
    %606 = vmatpush1.xpose.msra.mxu0 0.0
    %607 = vmatprep.subr.mxu0 0.0
    %608 = vmatpush1.xpose.msra.mxu0 0.0
    %609 = vmatprep.subr.mxu0 0.0
    %610 = vmatpush1.xpose.msra.mxu0 0.0
    %611 = vmatprep.subr.mxu0 0.0
    %612 = vmatpush1.xpose.msra.mxu0 0.0
    %613 = vmatprep.subr.mxu0 0.0
    %614 = vmatpush1.xpose.msra.mxu0 0.0
    %615 = vmatprep.subr.mxu0 0.0
    %616 = vmatpush1.xpose.msra.mxu0 0.0
    %617 = vmatprep.subr.mxu0 0.0
    %618 = vmatpush1.xpose.msra.mxu0 0.0
    %619 = vmatprep.subr.mxu0 0.0
    %620 = vmatpush1.xpose.msra.mxu0 0.0
    %621 = vmatprep.subr.mxu0 0.0
    %622 = vmatpush1.xpose.msra.mxu0 0.0
    %623 = vmatprep.subr.mxu0 0.0
    %624 = vmatpush1.xpose.msra.mxu0 0.0
    %625 = vmatprep.subr.mxu0 0.0
    %626 = vmatpush1.xpose.msra.mxu0 0.0
    %627 = vmatprep.subr.mxu0 0.0
    %628 = vmatpush1.xpose.msra.mxu0 0.0
    %629 = vmatprep.subr.mxu0 0.0
    %630 = vmatpush1.xpose.msra.mxu0 0.0
    %631 = vmatprep.subr.mxu0 0.0
    %632 = vmatpush1.xpose.msra.mxu0 0.0
    %633 = vmatprep.subr.mxu0 0.0
    %634 = vmatpush1.xpose.msra.mxu0 0.0
    %635 = vmatprep.subr.mxu0 0.0
    %636 = vmatpush1.xpose.msra.mxu0 0.0
    %637 = vmatprep.subr.mxu0 0.0
    %638 = vmatpush1.xpose.msra.mxu0 0.0
    %639 = vmatprep.subr.mxu0 0.0
    %640 = vmatpush1.xpose.msra.mxu0 0.0
    %641 = vmatprep.subr.mxu0 0.0
    %642 = vmatpush1.xpose.msra.mxu0 0.0
    %643 = vmatprep.subr.mxu0 0.0
    %644 = vmatpush1.xpose.msra.mxu0 0.0
    %645 = vmatprep.subr.mxu0 0.0
    %646 = vmatpush1.xpose.msra.mxu0 0.0
    %647 = vmatprep.subr.mxu0 0.0
    %648 = vmatpush1.xpose.msra.mxu0 0.0
    %649 = vmatprep.subr.mxu0 0.0
    %650 = vmatpush1.xpose.msra.mxu0 0.0
    %651 = vmatprep.mubr.f32.mxu0 0.0
    %652 = vmatmul.mubr.f32.gmra.mrb[0].mxu0 %v583
    %v653 = vpop.f32.mrb[0].mxu0
    %v654 = vadd.f32 0.0, %v653
    %v655 = vpop.f32.mrb[0].mxu0
    %656 = vdwg.mxu0
    %658 = vrot.lane.b32.xlu0 %v260, 120
    %v659 = vpop.permute.xlu0 %658
    %v660 = vsel %vm351, %v260, 0
    %v662 = vsel %vm351, %v659, 0
    %664 = vmatprep.subr.mxu0 0.0
    %665 = vmatpush1.xpose.msra.mxu0 %v662
    %666 = vmatprep.subr.mxu0 0.0
    %667 = vmatpush1.xpose.msra.mxu0 0.0
    %668 = vmatprep.subr.mxu0 0.0
    %669 = vmatpush1.xpose.msra.mxu0 0.0
    %670 = vmatprep.subr.mxu0 0.0
    %671 = vmatpush1.xpose.msra.mxu0 0.0
    %672 = vmatprep.subr.mxu0 0.0
    %673 = vmatpush1.xpose.msra.mxu0 0.0
    %674 = vmatprep.subr.mxu0 0.0
    %675 = vmatpush1.xpose.msra.mxu0 0.0
    %676 = vmatprep.subr.mxu0 0.0
    %677 = vmatpush1.xpose.msra.mxu0 0.0
    %678 = vmatprep.subr.mxu0 0.0
    %679 = vmatpush1.xpose.msra.mxu0 0.0
    %680 = vmatprep.subr.mxu0 0.0
    %681 = vmatpush1.xpose.msra.mxu0 0.0
    %682 = vmatprep.subr.mxu0 0.0
    %683 = vmatpush1.xpose.msra.mxu0 0.0
    %684 = vmatprep.subr.mxu0 0.0
    %685 = vmatpush1.xpose.msra.mxu0 0.0
    %686 = vmatprep.subr.mxu0 0.0
    %687 = vmatpush1.xpose.msra.mxu0 0.0
    %688 = vmatprep.subr.mxu0 0.0
    %689 = vmatpush1.xpose.msra.mxu0 0.0
    %690 = vmatprep.subr.mxu0 0.0
    %691 = vmatpush1.xpose.msra.mxu0 0.0
    %692 = vmatprep.subr.mxu0 0.0
    %693 = vmatpush1.xpose.msra.mxu0 0.0
    %694 = vmatprep.subr.mxu0 0.0
    %695 = vmatpush1.xpose.msra.mxu0 0.0
    %696 = vmatprep.subr.mxu0 0.0
    %697 = vmatpush1.xpose.msra.mxu0 0.0
    %698 = vmatprep.subr.mxu0 0.0
    %699 = vmatpush1.xpose.msra.mxu0 0.0
    %700 = vmatprep.subr.mxu0 0.0
    %701 = vmatpush1.xpose.msra.mxu0 0.0
    %702 = vmatprep.subr.mxu0 0.0
    %703 = vmatpush1.xpose.msra.mxu0 0.0
    %704 = vmatprep.subr.mxu0 0.0
    %705 = vmatpush1.xpose.msra.mxu0 0.0
    %706 = vmatprep.subr.mxu0 0.0
    %707 = vmatpush1.xpose.msra.mxu0 0.0
    %708 = vmatprep.subr.mxu0 0.0
    %709 = vmatpush1.xpose.msra.mxu0 0.0
    %710 = vmatprep.subr.mxu0 0.0
    %711 = vmatpush1.xpose.msra.mxu0 0.0
    %712 = vmatprep.subr.mxu0 0.0
    %713 = vmatpush1.xpose.msra.mxu0 0.0
    %714 = vmatprep.subr.mxu0 0.0
    %715 = vmatpush1.xpose.msra.mxu0 0.0
    %716 = vmatprep.subr.mxu0 0.0
    %717 = vmatpush1.xpose.msra.mxu0 0.0
    %718 = vmatprep.subr.mxu0 0.0
    %719 = vmatpush1.xpose.msra.mxu0 0.0
    %720 = vmatprep.subr.mxu0 0.0
    %721 = vmatpush1.xpose.msra.mxu0 0.0
    %722 = vmatprep.subr.mxu0 0.0
    %723 = vmatpush1.xpose.msra.mxu0 0.0
    %724 = vmatprep.subr.mxu0 0.0
    %725 = vmatpush1.xpose.msra.mxu0 0.0
    %726 = vmatprep.subr.mxu0 0.0
    %727 = vmatpush1.xpose.msra.mxu0 0.0
    %728 = vmatprep.mubr.f32.mxu0 0.0
    %729 = vmatmul.mubr.f32.gmra.mrb[0].mxu0 %v660
    %v730 = vpop.f32.mrb[0].mxu0
    %v731 = vadd.f32 0.0, %v730
    %v732 = vpop.f32.mrb[0].mxu0
    %733 = vdwg.mxu0
    %735 = vrot.lane.b32.xlu0 %v265, 120
    %v736 = vpop.permute.xlu0 %735
    %v737 = vsel %vm351, %v265, 0
    %v739 = vsel %vm351, %v736, 0
    %741 = vmatprep.subr.mxu0 0.0
    %742 = vmatpush1.xpose.msra.mxu0 %v739
    %743 = vmatprep.subr.mxu0 0.0
    %744 = vmatpush1.xpose.msra.mxu0 0.0
    %745 = vmatprep.subr.mxu0 0.0
    %746 = vmatpush1.xpose.msra.mxu0 0.0
    %747 = vmatprep.subr.mxu0 0.0
    %748 = vmatpush1.xpose.msra.mxu0 0.0
    %749 = vmatprep.subr.mxu0 0.0
    %750 = vmatpush1.xpose.msra.mxu0 0.0
    %751 = vmatprep.subr.mxu0 0.0
    %752 = vmatpush1.xpose.msra.mxu0 0.0
    %753 = vmatprep.subr.mxu0 0.0
    %754 = vmatpush1.xpose.msra.mxu0 0.0
    %755 = vmatprep.subr.mxu0 0.0
    %756 = vmatpush1.xpose.msra.mxu0 0.0
    %757 = vmatprep.subr.mxu0 0.0
    %758 = vmatpush1.xpose.msra.mxu0 0.0
    %759 = vmatprep.subr.mxu0 0.0
    %760 = vmatpush1.xpose.msra.mxu0 0.0
    %761 = vmatprep.subr.mxu0 0.0
    %762 = vmatpush1.xpose.msra.mxu0 0.0
    %763 = vmatprep.subr.mxu0 0.0
    %764 = vmatpush1.xpose.msra.mxu0 0.0
    %765 = vmatprep.subr.mxu0 0.0
    %766 = vmatpush1.xpose.msra.mxu0 0.0
    %767 = vmatprep.subr.mxu0 0.0
    %768 = vmatpush1.xpose.msra.mxu0 0.0
    %769 = vmatprep.subr.mxu0 0.0
    %770 = vmatpush1.xpose.msra.mxu0 0.0
    %771 = vmatprep.subr.mxu0 0.0
    %772 = vmatpush1.xpose.msra.mxu0 0.0
    %773 = vmatprep.subr.mxu0 0.0
    %774 = vmatpush1.xpose.msra.mxu0 0.0
    %775 = vmatprep.subr.mxu0 0.0
    %776 = vmatpush1.xpose.msra.mxu0 0.0
    %777 = vmatprep.subr.mxu0 0.0
    %778 = vmatpush1.xpose.msra.mxu0 0.0
    %779 = vmatprep.subr.mxu0 0.0
    %780 = vmatpush1.xpose.msra.mxu0 0.0
    %781 = vmatprep.subr.mxu0 0.0
    %782 = vmatpush1.xpose.msra.mxu0 0.0
    %783 = vmatprep.subr.mxu0 0.0
    %784 = vmatpush1.xpose.msra.mxu0 0.0
    %785 = vmatprep.subr.mxu0 0.0
    %786 = vmatpush1.xpose.msra.mxu0 0.0
    %787 = vmatprep.subr.mxu0 0.0
    %788 = vmatpush1.xpose.msra.mxu0 0.0
    %789 = vmatprep.subr.mxu0 0.0
    %790 = vmatpush1.xpose.msra.mxu0 0.0
    %791 = vmatprep.subr.mxu0 0.0
    %792 = vmatpush1.xpose.msra.mxu0 0.0
    %793 = vmatprep.subr.mxu0 0.0
    %794 = vmatpush1.xpose.msra.mxu0 0.0
    %795 = vmatprep.subr.mxu0 0.0
    %796 = vmatpush1.xpose.msra.mxu0 0.0
    %797 = vmatprep.subr.mxu0 0.0
    %798 = vmatpush1.xpose.msra.mxu0 0.0
    %799 = vmatprep.subr.mxu0 0.0
    %800 = vmatpush1.xpose.msra.mxu0 0.0
    %801 = vmatprep.subr.mxu0 0.0
    %802 = vmatpush1.xpose.msra.mxu0 0.0
    %803 = vmatprep.subr.mxu0 0.0
    %804 = vmatpush1.xpose.msra.mxu0 0.0
    %805 = vmatprep.mubr.f32.mxu0 0.0
    %806 = vmatmul.mubr.f32.gmra.mrb[0].mxu0 %v737
    %v807 = vpop.f32.mrb[0].mxu0
    %v808 = vadd.f32 0.0, %v807
    %v809 = vpop.f32.mrb[0].mxu0
    %810 = vdwg.mxu0
    %812 = vrot.lane.b32.xlu0 %v335, 120
    %v813 = vpop.permute.xlu0 %812
    %v814 = vsel %vm351, %v335, 0
    %v816 = vsel %vm351, %v813, 0
    %818 = vmatprep.subr.mxu0 0.0
    %819 = vmatpush1.xpose.msra.mxu0 %v816
    %820 = vmatprep.subr.mxu0 0.0
    %821 = vmatpush1.xpose.msra.mxu0 0.0
    %822 = vmatprep.subr.mxu0 0.0
    %823 = vmatpush1.xpose.msra.mxu0 0.0
    %824 = vmatprep.subr.mxu0 0.0
    %825 = vmatpush1.xpose.msra.mxu0 0.0
    %826 = vmatprep.subr.mxu0 0.0
    %827 = vmatpush1.xpose.msra.mxu0 0.0
    %828 = vmatprep.subr.mxu0 0.0
    %829 = vmatpush1.xpose.msra.mxu0 0.0
    %830 = vmatprep.subr.mxu0 0.0
    %831 = vmatpush1.xpose.msra.mxu0 0.0
    %832 = vmatprep.subr.mxu0 0.0
    %833 = vmatpush1.xpose.msra.mxu0 0.0
    %834 = vmatprep.subr.mxu0 0.0
    %835 = vmatpush1.xpose.msra.mxu0 0.0
    %836 = vmatprep.subr.mxu0 0.0
    %837 = vmatpush1.xpose.msra.mxu0 0.0
    %838 = vmatprep.subr.mxu0 0.0
    %839 = vmatpush1.xpose.msra.mxu0 0.0
    %840 = vmatprep.subr.mxu0 0.0
    %841 = vmatpush1.xpose.msra.mxu0 0.0
    %842 = vmatprep.subr.mxu0 0.0
    %843 = vmatpush1.xpose.msra.mxu0 0.0
    %844 = vmatprep.subr.mxu0 0.0
    %845 = vmatpush1.xpose.msra.mxu0 0.0
    %846 = vmatprep.subr.mxu0 0.0
    %847 = vmatpush1.xpose.msra.mxu0 0.0
    %848 = vmatprep.subr.mxu0 0.0
    %849 = vmatpush1.xpose.msra.mxu0 0.0
    %850 = vmatprep.subr.mxu0 0.0
    %851 = vmatpush1.xpose.msra.mxu0 0.0
    %852 = vmatprep.subr.mxu0 0.0
    %853 = vmatpush1.xpose.msra.mxu0 0.0
    %854 = vmatprep.subr.mxu0 0.0
    %855 = vmatpush1.xpose.msra.mxu0 0.0
    %856 = vmatprep.subr.mxu0 0.0
    %857 = vmatpush1.xpose.msra.mxu0 0.0
    %858 = vmatprep.subr.mxu0 0.0
    %859 = vmatpush1.xpose.msra.mxu0 0.0
    %860 = vmatprep.subr.mxu0 0.0
    %861 = vmatpush1.xpose.msra.mxu0 0.0
    %862 = vmatprep.subr.mxu0 0.0
    %863 = vmatpush1.xpose.msra.mxu0 0.0
    %864 = vmatprep.subr.mxu0 0.0
    %865 = vmatpush1.xpose.msra.mxu0 0.0
    %866 = vmatprep.subr.mxu0 0.0
    %867 = vmatpush1.xpose.msra.mxu0 0.0
    %868 = vmatprep.subr.mxu0 0.0
    %869 = vmatpush1.xpose.msra.mxu0 0.0
    %870 = vmatprep.subr.mxu0 0.0
    %871 = vmatpush1.xpose.msra.mxu0 0.0
    %872 = vmatprep.subr.mxu0 0.0
    %873 = vmatpush1.xpose.msra.mxu0 0.0
    %874 = vmatprep.subr.mxu0 0.0
    %875 = vmatpush1.xpose.msra.mxu0 0.0
    %876 = vmatprep.subr.mxu0 0.0
    %877 = vmatpush1.xpose.msra.mxu0 0.0
    %878 = vmatprep.subr.mxu0 0.0
    %879 = vmatpush1.xpose.msra.mxu0 0.0
    %880 = vmatprep.subr.mxu0 0.0
    %881 = vmatpush1.xpose.msra.mxu0 0.0
    %882 = vmatprep.mubr.f32.mxu0 0.0
    %883 = vmatmul.mubr.f32.gmra.mrb[0].mxu0 %v814
    %v884 = vpop.f32.mrb[0].mxu0
    %v885 = vadd.f32 0.0, %v884
    %v886 = vpop.f32.mrb[0].mxu0
    %887 = vdwg.mxu0
    %889 = vrot.lane.b32.xlu0 %v340, 120
    %v890 = vpop.permute.xlu0 %889
    %v891 = vsel %vm351, %v340, 0
    %v893 = vsel %vm351, %v890, 0
    %895 = vmatprep.subr.mxu0 0.0
    %896 = vmatpush1.xpose.msra.mxu0 %v893
    %897 = vmatprep.subr.mxu0 0.0
    %898 = vmatpush1.xpose.msra.mxu0 0.0
    %899 = vmatprep.subr.mxu0 0.0
    %900 = vmatpush1.xpose.msra.mxu0 0.0
    %901 = vmatprep.subr.mxu0 0.0
    %902 = vmatpush1.xpose.msra.mxu0 0.0
    %903 = vmatprep.subr.mxu0 0.0
    %904 = vmatpush1.xpose.msra.mxu0 0.0
    %905 = vmatprep.subr.mxu0 0.0
    %906 = vmatpush1.xpose.msra.mxu0 0.0
    %907 = vmatprep.subr.mxu0 0.0
    %908 = vmatpush1.xpose.msra.mxu0 0.0
    %909 = vmatprep.subr.mxu0 0.0
    %910 = vmatpush1.xpose.msra.mxu0 0.0
    %911 = vmatprep.subr.mxu0 0.0
    %912 = vmatpush1.xpose.msra.mxu0 0.0
    %913 = vmatprep.subr.mxu0 0.0
    %914 = vmatpush1.xpose.msra.mxu0 0.0
    %915 = vmatprep.subr.mxu0 0.0
    %916 = vmatpush1.xpose.msra.mxu0 0.0
    %917 = vmatprep.subr.mxu0 0.0
    %918 = vmatpush1.xpose.msra.mxu0 0.0
    %919 = vmatprep.subr.mxu0 0.0
    %920 = vmatpush1.xpose.msra.mxu0 0.0
    %921 = vmatprep.subr.mxu0 0.0
    %922 = vmatpush1.xpose.msra.mxu0 0.0
    %923 = vmatprep.subr.mxu0 0.0
    %924 = vmatpush1.xpose.msra.mxu0 0.0
    %925 = vmatprep.subr.mxu0 0.0
    %926 = vmatpush1.xpose.msra.mxu0 0.0
    %927 = vmatprep.subr.mxu0 0.0
    %928 = vmatpush1.xpose.msra.mxu0 0.0
    %929 = vmatprep.subr.mxu0 0.0
    %930 = vmatpush1.xpose.msra.mxu0 0.0
    %931 = vmatprep.subr.mxu0 0.0
    %932 = vmatpush1.xpose.msra.mxu0 0.0
    %933 = vmatprep.subr.mxu0 0.0
    %934 = vmatpush1.xpose.msra.mxu0 0.0
    %935 = vmatprep.subr.mxu0 0.0
    %936 = vmatpush1.xpose.msra.mxu0 0.0
    %937 = vmatprep.subr.mxu0 0.0
    %938 = vmatpush1.xpose.msra.mxu0 0.0
    %939 = vmatprep.subr.mxu0 0.0
    %940 = vmatpush1.xpose.msra.mxu0 0.0
    %941 = vmatprep.subr.mxu0 0.0
    %942 = vmatpush1.xpose.msra.mxu0 0.0
    %943 = vmatprep.subr.mxu0 0.0
    %944 = vmatpush1.xpose.msra.mxu0 0.0
    %945 = vmatprep.subr.mxu0 0.0
    %946 = vmatpush1.xpose.msra.mxu0 0.0
    %947 = vmatprep.subr.mxu0 0.0
    %948 = vmatpush1.xpose.msra.mxu0 0.0
    %949 = vmatprep.subr.mxu0 0.0
    %950 = vmatpush1.xpose.msra.mxu0 0.0
    %951 = vmatprep.subr.mxu0 0.0
    %952 = vmatpush1.xpose.msra.mxu0 0.0
    %953 = vmatprep.subr.mxu0 0.0
    %954 = vmatpush1.xpose.msra.mxu0 0.0
    %955 = vmatprep.subr.mxu0 0.0
    %956 = vmatpush1.xpose.msra.mxu0 0.0
    %957 = vmatprep.subr.mxu0 0.0
    %958 = vmatpush1.xpose.msra.mxu0 0.0
    %959 = vmatprep.mubr.f32.mxu0 0.0
    %960 = vmatmul.mubr.f32.gmra.mrb[0].mxu0 %v891
    %v961 = vpop.f32.mrb[0].mxu0
    %v962 = vadd.f32 0.0, %v961
    %v963 = vpop.f32.mrb[0].mxu0
    %964 = vdwg.mxu0
    %v965 = vsel %vm347, 1, 0
    %vm966 = vcmp.eq.s32.totalorder %v965, 1
    %v967 = vsel %vm966, %v423, -1e+30
    %v968 = vsel %vm966, %v500, -1e+30
    %v969 = vsel %vm966, %v577, -1e+30
    %v970 = vsel %vm966, %v654, -1e+30
    %v971 = vsel %vm966, %v731, -1e+30
    %v972 = vsel %vm966, %v808, -1e+30
    %v973 = vsel %vm966, %v885, -1e+30
    %v974 = vsel %vm966, %v962, -1e+30
    %v975 = vsel %vm351, %v967, -inf
    %976 = vmax.xlane.f32.xlu0 %v975
    %v977 = vpop.xlane.xlu0 %976
    %v978 = vsel %vm351, %v968, -inf
    %979 = vmax.xlane.f32.xlu0 %v978
    %v980 = vpop.xlane.xlu0 %979
    %v981 = vsel %vm351, %v969, -inf
    %982 = vmax.xlane.f32.xlu0 %v981
    %v983 = vpop.xlane.xlu0 %982
    %v984 = vsel %vm351, %v970, -inf
    %985 = vmax.xlane.f32.xlu0 %v984
    %v986 = vpop.xlane.xlu0 %985
    %v987 = vsel %vm351, %v971, -inf
    %988 = vmax.xlane.f32.xlu0 %v987
    %v989 = vpop.xlane.xlu0 %988
    %v990 = vsel %vm351, %v972, -inf
    %991 = vmax.xlane.f32.xlu0 %v990
    %v992 = vpop.xlane.xlu0 %991
    %v993 = vsel %vm351, %v973, -inf
    %994 = vmax.xlane.f32.xlu0 %v993
    %v995 = vpop.xlane.xlu0 %994
    %v996 = vsel %vm351, %v974, -inf
    %997 = vmax.xlane.f32.xlu0 %v996
    %v998 = vpop.xlane.xlu0 %997
    %v999 = vsub.f32 %v967, %v977
    %v1000 = vsub.f32 %v968, %v980
    %v1001 = vsub.f32 %v969, %v983
    %v1002 = vsub.f32 %v970, %v986
    %v1003 = vsub.f32 %v971, %v989
    %v1004 = vsub.f32 %v972, %v992
    %v1005 = vsub.f32 %v973, %v995
    %v1006 = vsub.f32 %v974, %v998
    %v1007 = vmul.f32 %v999, 1.442695
    %v1008 = vpow.pop %v1007
    %v1009 = vmul.f32 %v1000, 1.442695
    %v1010 = vpow.pop %v1009
    %v1011 = vmul.f32 %v1001, 1.442695
    %v1012 = vpow.pop %v1011
    %v1013 = vmul.f32 %v1002, 1.442695
    %v1014 = vpow.pop %v1013
    %v1015 = vmul.f32 %v1003, 1.442695
    %v1016 = vpow.pop %v1015
    %v1017 = vmul.f32 %v1004, 1.442695
    %v1018 = vpow.pop %v1017
    %v1019 = vmul.f32 %v1005, 1.442695
    %v1020 = vpow.pop %v1019
    %v1021 = vmul.f32 %v1006, 1.442695
    %v1022 = vpow.pop %v1021
    %v1023 = vsel %vm351, %v1008, 0.0
    %1024 = vadd.xlane.f32.xlu0 %v1023
    %v1025 = vpop.xlane.xlu0 %1024
    %v1026 = vsel %vm351, %v1010, 0.0
    %1027 = vadd.xlane.f32.xlu0 %v1026
    %v1028 = vpop.xlane.xlu0 %1027
    %v1029 = vsel %vm351, %v1012, 0.0
    %1030 = vadd.xlane.f32.xlu0 %v1029
    %v1031 = vpop.xlane.xlu0 %1030
    %v1032 = vsel %vm351, %v1014, 0.0
    %1033 = vadd.xlane.f32.xlu0 %v1032
    %v1034 = vpop.xlane.xlu0 %1033
    %v1035 = vsel %vm351, %v1016, 0.0
    %1036 = vadd.xlane.f32.xlu0 %v1035
    %v1037 = vpop.xlane.xlu0 %1036
    %v1038 = vsel %vm351, %v1018, 0.0
    %1039 = vadd.xlane.f32.xlu0 %v1038
    %v1040 = vpop.xlane.xlu0 %1039
    %v1041 = vsel %vm351, %v1020, 0.0
    %1042 = vadd.xlane.f32.xlu0 %v1041
    %v1043 = vpop.xlane.xlu0 %1042
    %v1044 = vsel %vm351, %v1022, 0.0
    %1045 = vadd.xlane.f32.xlu0 %v1044
    %v1046 = vpop.xlane.xlu0 %1045
    %v1047 = vrcp.pop %v1025
    %v1048 = vrcp.pop %v1028
    %v1049 = vrcp.pop %v1031
    %v1050 = vrcp.pop %v1034
    %v1051 = vrcp.pop %v1037
    %v1052 = vrcp.pop %v1040
    %v1053 = vrcp.pop %v1043
    %v1054 = vrcp.pop %v1046
    %v1055 = vmul.f32 %v1008, %v1047
    %v1056 = vmul.f32 %v1010, %v1048
    %v1057 = vmul.f32 %v1012, %v1049
    %v1058 = vmul.f32 %v1014, %v1050
    %v1059 = vmul.f32 %v1016, %v1051
    %v1060 = vmul.f32 %v1018, %v1052
    %v1061 = vmul.f32 %v1020, %v1053
    %v1062 = vmul.f32 %v1022, %v1054
    %1063 = vrot.lane.b32.xlu0 %v110, 112
    %v1064 = vpop.permute.xlu0 %1063
    %v1067 = vsel %vm351, %v1055, 0
    %1069 = vmatprep.subr.mxu0 0.0
    %1070 = vmatpush1.msra.mxu0 %v1064
    %1071 = vmatprep.subr.mxu0 0.0
    %1072 = vmatpush1.msra.mxu0 0.0
    %1073 = vmatprep.subr.mxu0 0.0
    %1074 = vmatpush1.msra.mxu0 0.0
    %1075 = vmatprep.subr.mxu0 0.0
    %1076 = vmatpush1.msra.mxu0 0.0
    %1077 = vmatprep.subr.mxu0 0.0
    %1078 = vmatpush1.msra.mxu0 0.0
    %1079 = vmatprep.subr.mxu0 0.0
    %1080 = vmatpush1.msra.mxu0 0.0
    %1081 = vmatprep.subr.mxu0 0.0
    %1082 = vmatpush1.msra.mxu0 0.0
    %1083 = vmatprep.subr.mxu0 0.0
    %1084 = vmatpush1.msra.mxu0 0.0
    %1085 = vmatprep.subr.mxu0 0.0
    %1086 = vmatpush1.msra.mxu0 0.0
    %1087 = vmatprep.subr.mxu0 0.0
    %1088 = vmatpush1.msra.mxu0 0.0
    %1089 = vmatprep.subr.mxu0 0.0
    %1090 = vmatpush1.msra.mxu0 0.0
    %1091 = vmatprep.subr.mxu0 0.0
    %1092 = vmatpush1.msra.mxu0 0.0
    %1093 = vmatprep.subr.mxu0 0.0
    %1094 = vmatpush1.msra.mxu0 0.0
    %1095 = vmatprep.subr.mxu0 0.0
    %1096 = vmatpush1.msra.mxu0 0.0
    %1097 = vmatprep.subr.mxu0 0.0
    %1098 = vmatpush1.msra.mxu0 0.0
    %1099 = vmatprep.subr.mxu0 0.0
    %1100 = vmatpush1.msra.mxu0 0.0
    %1101 = vmatprep.subr.mxu0 0.0
    %1102 = vmatpush1.msra.mxu0 0.0
    %1103 = vmatprep.subr.mxu0 0.0
    %1104 = vmatpush1.msra.mxu0 0.0
    %1105 = vmatprep.subr.mxu0 0.0
    %1106 = vmatpush1.msra.mxu0 0.0
    %1107 = vmatprep.subr.mxu0 0.0
    %1108 = vmatpush1.msra.mxu0 0.0
    %1109 = vmatprep.subr.mxu0 0.0
    %1110 = vmatpush1.msra.mxu0 0.0
    %1111 = vmatprep.subr.mxu0 0.0
    %1112 = vmatpush1.msra.mxu0 0.0
    %1113 = vmatprep.subr.mxu0 0.0
    %1114 = vmatpush1.msra.mxu0 0.0
    %1115 = vmatprep.subr.mxu0 0.0
    %1116 = vmatpush1.msra.mxu0 0.0
    %1117 = vmatprep.subr.mxu0 0.0
    %1118 = vmatpush1.msra.mxu0 0.0
    %1119 = vmatprep.subr.mxu0 0.0
    %1120 = vmatpush1.msra.mxu0 0.0
    %1121 = vmatprep.subr.mxu0 0.0
    %1122 = vmatpush1.msra.mxu0 0.0
    %1123 = vmatprep.subr.mxu0 0.0
    %1124 = vmatpush1.msra.mxu0 0.0
    %1125 = vmatprep.subr.mxu0 0.0
    %1126 = vmatpush1.msra.mxu0 0.0
    %1127 = vmatprep.subr.mxu0 0.0
    %1128 = vmatpush1.msra.mxu0 0.0
    %1129 = vmatprep.subr.mxu0 0.0
    %1130 = vmatpush1.msra.mxu0 0.0
    %1131 = vmatprep.subr.mxu0 0.0
    %1132 = vmatpush1.msra.mxu0 0.0
    %1133 = vmatprep.mubr.f32.mxu0 0.0
    %1134 = vmatmul.mubr.f32.gmra.mrb[0].mxu0 %v1067
    %v1135 = vpop.f32.mrb[0].mxu0
    %v1136 = vadd.f32 0.0, %v1135
    %v1137 = vpop.f32.mrb[0].mxu0
    %1138 = vdwg.mxu0
    %1139 = vrot.lane.b32.xlu0 %v115, 112
    %v1140 = vpop.permute.xlu0 %1139
    %v1143 = vsel %vm351, %v1056, 0
    %1145 = vmatprep.subr.mxu0 0.0
    %1146 = vmatpush1.msra.mxu0 %v1140
    %1147 = vmatprep.subr.mxu0 0.0
    %1148 = vmatpush1.msra.mxu0 0.0
    %1149 = vmatprep.subr.mxu0 0.0
    %1150 = vmatpush1.msra.mxu0 0.0
    %1151 = vmatprep.subr.mxu0 0.0
    %1152 = vmatpush1.msra.mxu0 0.0
    %1153 = vmatprep.subr.mxu0 0.0
    %1154 = vmatpush1.msra.mxu0 0.0
    %1155 = vmatprep.subr.mxu0 0.0
    %1156 = vmatpush1.msra.mxu0 0.0
    %1157 = vmatprep.subr.mxu0 0.0
    %1158 = vmatpush1.msra.mxu0 0.0
    %1159 = vmatprep.subr.mxu0 0.0
    %1160 = vmatpush1.msra.mxu0 0.0
    %1161 = vmatprep.subr.mxu0 0.0
    %1162 = vmatpush1.msra.mxu0 0.0
    %1163 = vmatprep.subr.mxu0 0.0
    %1164 = vmatpush1.msra.mxu0 0.0
    %1165 = vmatprep.subr.mxu0 0.0
    %1166 = vmatpush1.msra.mxu0 0.0
    %1167 = vmatprep.subr.mxu0 0.0
    %1168 = vmatpush1.msra.mxu0 0.0
    %1169 = vmatprep.subr.mxu0 0.0
    %1170 = vmatpush1.msra.mxu0 0.0
    %1171 = vmatprep.subr.mxu0 0.0
    %1172 = vmatpush1.msra.mxu0 0.0
    %1173 = vmatprep.subr.mxu0 0.0
    %1174 = vmatpush1.msra.mxu0 0.0
    %1175 = vmatprep.subr.mxu0 0.0
    %1176 = vmatpush1.msra.mxu0 0.0
    %1177 = vmatprep.subr.mxu0 0.0
    %1178 = vmatpush1.msra.mxu0 0.0
    %1179 = vmatprep.subr.mxu0 0.0
    %1180 = vmatpush1.msra.mxu0 0.0
    %1181 = vmatprep.subr.mxu0 0.0
    %1182 = vmatpush1.msra.mxu0 0.0
    %1183 = vmatprep.subr.mxu0 0.0
    %1184 = vmatpush1.msra.mxu0 0.0
    %1185 = vmatprep.subr.mxu0 0.0
    %1186 = vmatpush1.msra.mxu0 0.0
    %1187 = vmatprep.subr.mxu0 0.0
    %1188 = vmatpush1.msra.mxu0 0.0
    %1189 = vmatprep.subr.mxu0 0.0
    %1190 = vmatpush1.msra.mxu0 0.0
    %1191 = vmatprep.subr.mxu0 0.0
    %1192 = vmatpush1.msra.mxu0 0.0
    %1193 = vmatprep.subr.mxu0 0.0
    %1194 = vmatpush1.msra.mxu0 0.0
    %1195 = vmatprep.subr.mxu0 0.0
    %1196 = vmatpush1.msra.mxu0 0.0
    %1197 = vmatprep.subr.mxu0 0.0
    %1198 = vmatpush1.msra.mxu0 0.0
    %1199 = vmatprep.subr.mxu0 0.0
    %1200 = vmatpush1.msra.mxu0 0.0
    %1201 = vmatprep.subr.mxu0 0.0
    %1202 = vmatpush1.msra.mxu0 0.0
    %1203 = vmatprep.subr.mxu0 0.0
    %1204 = vmatpush1.msra.mxu0 0.0
    %1205 = vmatprep.subr.mxu0 0.0
    %1206 = vmatpush1.msra.mxu0 0.0
    %1207 = vmatprep.subr.mxu0 0.0
    %1208 = vmatpush1.msra.mxu0 0.0
    %1209 = vmatprep.mubr.f32.mxu0 0.0
    %1210 = vmatmul.mubr.f32.gmra.mrb[0].mxu0 %v1143
    %v1211 = vpop.f32.mrb[0].mxu0
    %v1212 = vadd.f32 0.0, %v1211
    %v1213 = vpop.f32.mrb[0].mxu0
    %1214 = vdwg.mxu0
    %1215 = vrot.lane.b32.xlu0 %v185, 112
    %v1216 = vpop.permute.xlu0 %1215
    %v1219 = vsel %vm351, %v1057, 0
    %1221 = vmatprep.subr.mxu0 0.0
    %1222 = vmatpush1.msra.mxu0 %v1216
    %1223 = vmatprep.subr.mxu0 0.0
    %1224 = vmatpush1.msra.mxu0 0.0
    %1225 = vmatprep.subr.mxu0 0.0
    %1226 = vmatpush1.msra.mxu0 0.0
    %1227 = vmatprep.subr.mxu0 0.0
    %1228 = vmatpush1.msra.mxu0 0.0
    %1229 = vmatprep.subr.mxu0 0.0
    %1230 = vmatpush1.msra.mxu0 0.0
    %1231 = vmatprep.subr.mxu0 0.0
    %1232 = vmatpush1.msra.mxu0 0.0
    %1233 = vmatprep.subr.mxu0 0.0
    %1234 = vmatpush1.msra.mxu0 0.0
    %1235 = vmatprep.subr.mxu0 0.0
    %1236 = vmatpush1.msra.mxu0 0.0
    %1237 = vmatprep.subr.mxu0 0.0
    %1238 = vmatpush1.msra.mxu0 0.0
    %1239 = vmatprep.subr.mxu0 0.0
    %1240 = vmatpush1.msra.mxu0 0.0
    %1241 = vmatprep.subr.mxu0 0.0
    %1242 = vmatpush1.msra.mxu0 0.0
    %1243 = vmatprep.subr.mxu0 0.0
    %1244 = vmatpush1.msra.mxu0 0.0
    %1245 = vmatprep.subr.mxu0 0.0
    %1246 = vmatpush1.msra.mxu0 0.0
    %1247 = vmatprep.subr.mxu0 0.0
    %1248 = vmatpush1.msra.mxu0 0.0
    %1249 = vmatprep.subr.mxu0 0.0
    %1250 = vmatpush1.msra.mxu0 0.0
    %1251 = vmatprep.subr.mxu0 0.0
    %1252 = vmatpush1.msra.mxu0 0.0
    %1253 = vmatprep.subr.mxu0 0.0
    %1254 = vmatpush1.msra.mxu0 0.0
    %1255 = vmatprep.subr.mxu0 0.0
    %1256 = vmatpush1.msra.mxu0 0.0
    %1257 = vmatprep.subr.mxu0 0.0
    %1258 = vmatpush1.msra.mxu0 0.0
    %1259 = vmatprep.subr.mxu0 0.0
    %1260 = vmatpush1.msra.mxu0 0.0
    %1261 = vmatprep.subr.mxu0 0.0
    %1262 = vmatpush1.msra.mxu0 0.0
    %1263 = vmatprep.subr.mxu0 0.0
    %1264 = vmatpush1.msra.mxu0 0.0
    %1265 = vmatprep.subr.mxu0 0.0
    %1266 = vmatpush1.msra.mxu0 0.0
    %1267 = vmatprep.subr.mxu0 0.0
    %1268 = vmatpush1.msra.mxu0 0.0
    %1269 = vmatprep.subr.mxu0 0.0
    %1270 = vmatpush1.msra.mxu0 0.0
    %1271 = vmatprep.subr.mxu0 0.0
    %1272 = vmatpush1.msra.mxu0 0.0
    %1273 = vmatprep.subr.mxu0 0.0
    %1274 = vmatpush1.msra.mxu0 0.0
    %1275 = vmatprep.subr.mxu0 0.0
    %1276 = vmatpush1.msra.mxu0 0.0
    %1277 = vmatprep.subr.mxu0 0.0
    %1278 = vmatpush1.msra.mxu0 0.0
    %1279 = vmatprep.subr.mxu0 0.0
    %1280 = vmatpush1.msra.mxu0 0.0
    %1281 = vmatprep.subr.mxu0 0.0
    %1282 = vmatpush1.msra.mxu0 0.0
    %1283 = vmatprep.subr.mxu0 0.0
    %1284 = vmatpush1.msra.mxu0 0.0
    %1285 = vmatprep.mubr.f32.mxu0 0.0
    %1286 = vmatmul.mubr.f32.gmra.mrb[0].mxu0 %v1219
    %v1287 = vpop.f32.mrb[0].mxu0
    %v1288 = vadd.f32 0.0, %v1287
    %v1289 = vpop.f32.mrb[0].mxu0
    %1290 = vdwg.mxu0
    %1291 = vrot.lane.b32.xlu0 %v190, 112
    %v1292 = vpop.permute.xlu0 %1291
    %v1295 = vsel %vm351, %v1058, 0
    %1297 = vmatprep.subr.mxu0 0.0
    %1298 = vmatpush1.msra.mxu0 %v1292
    %1299 = vmatprep.subr.mxu0 0.0
    %1300 = vmatpush1.msra.mxu0 0.0
    %1301 = vmatprep.subr.mxu0 0.0
    %1302 = vmatpush1.msra.mxu0 0.0
    %1303 = vmatprep.subr.mxu0 0.0
    %1304 = vmatpush1.msra.mxu0 0.0
    %1305 = vmatprep.subr.mxu0 0.0
    %1306 = vmatpush1.msra.mxu0 0.0
    %1307 = vmatprep.subr.mxu0 0.0
    %1308 = vmatpush1.msra.mxu0 0.0
    %1309 = vmatprep.subr.mxu0 0.0
    %1310 = vmatpush1.msra.mxu0 0.0
    %1311 = vmatprep.subr.mxu0 0.0
    %1312 = vmatpush1.msra.mxu0 0.0
    %1313 = vmatprep.subr.mxu0 0.0
    %1314 = vmatpush1.msra.mxu0 0.0
    %1315 = vmatprep.subr.mxu0 0.0
    %1316 = vmatpush1.msra.mxu0 0.0
    %1317 = vmatprep.subr.mxu0 0.0
    %1318 = vmatpush1.msra.mxu0 0.0
    %1319 = vmatprep.subr.mxu0 0.0
    %1320 = vmatpush1.msra.mxu0 0.0
    %1321 = vmatprep.subr.mxu0 0.0
    %1322 = vmatpush1.msra.mxu0 0.0
    %1323 = vmatprep.subr.mxu0 0.0
    %1324 = vmatpush1.msra.mxu0 0.0
    %1325 = vmatprep.subr.mxu0 0.0
    %1326 = vmatpush1.msra.mxu0 0.0
    %1327 = vmatprep.subr.mxu0 0.0
    %1328 = vmatpush1.msra.mxu0 0.0
    %1329 = vmatprep.subr.mxu0 0.0
    %1330 = vmatpush1.msra.mxu0 0.0
    %1331 = vmatprep.subr.mxu0 0.0
    %1332 = vmatpush1.msra.mxu0 0.0
    %1333 = vmatprep.subr.mxu0 0.0
    %1334 = vmatpush1.msra.mxu0 0.0
    %1335 = vmatprep.subr.mxu0 0.0
    %1336 = vmatpush1.msra.mxu0 0.0
    %1337 = vmatprep.subr.mxu0 0.0
    %1338 = vmatpush1.msra.mxu0 0.0
    %1339 = vmatprep.subr.mxu0 0.0
    %1340 = vmatpush1.msra.mxu0 0.0
    %1341 = vmatprep.subr.mxu0 0.0
    %1342 = vmatpush1.msra.mxu0 0.0
    %1343 = vmatprep.subr.mxu0 0.0
    %1344 = vmatpush1.msra.mxu0 0.0
    %1345 = vmatprep.subr.mxu0 0.0
    %1346 = vmatpush1.msra.mxu0 0.0
    %1347 = vmatprep.subr.mxu0 0.0
    %1348 = vmatpush1.msra.mxu0 0.0
    %1349 = vmatprep.subr.mxu0 0.0
    %1350 = vmatpush1.msra.mxu0 0.0
    %1351 = vmatprep.subr.mxu0 0.0
    %1352 = vmatpush1.msra.mxu0 0.0
    %1353 = vmatprep.subr.mxu0 0.0
    %1354 = vmatpush1.msra.mxu0 0.0
    %1355 = vmatprep.subr.mxu0 0.0
    %1356 = vmatpush1.msra.mxu0 0.0
    %1357 = vmatprep.subr.mxu0 0.0
    %1358 = vmatpush1.msra.mxu0 0.0
    %1359 = vmatprep.subr.mxu0 0.0
    %1360 = vmatpush1.msra.mxu0 0.0
    %1361 = vmatprep.mubr.f32.mxu0 0.0
    %1362 = vmatmul.mubr.f32.gmra.mrb[0].mxu0 %v1295
    %v1363 = vpop.f32.mrb[0].mxu0
    %v1364 = vadd.f32 0.0, %v1363
    %v1365 = vpop.f32.mrb[0].mxu0
    %1366 = vdwg.mxu0
    %1367 = vrot.lane.b32.xlu0 %v260, 112
    %v1368 = vpop.permute.xlu0 %1367
    %v1371 = vsel %vm351, %v1059, 0
    %1373 = vmatprep.subr.mxu0 0.0
    %1374 = vmatpush1.msra.mxu0 %v1368
    %1375 = vmatprep.subr.mxu0 0.0
    %1376 = vmatpush1.msra.mxu0 0.0
    %1377 = vmatprep.subr.mxu0 0.0
    %1378 = vmatpush1.msra.mxu0 0.0
    %1379 = vmatprep.subr.mxu0 0.0
    %1380 = vmatpush1.msra.mxu0 0.0
    %1381 = vmatprep.subr.mxu0 0.0
    %1382 = vmatpush1.msra.mxu0 0.0
    %1383 = vmatprep.subr.mxu0 0.0
    %1384 = vmatpush1.msra.mxu0 0.0
    %1385 = vmatprep.subr.mxu0 0.0
    %1386 = vmatpush1.msra.mxu0 0.0
    %1387 = vmatprep.subr.mxu0 0.0
    %1388 = vmatpush1.msra.mxu0 0.0
    %1389 = vmatprep.subr.mxu0 0.0
    %1390 = vmatpush1.msra.mxu0 0.0
    %1391 = vmatprep.subr.mxu0 0.0
    %1392 = vmatpush1.msra.mxu0 0.0
    %1393 = vmatprep.subr.mxu0 0.0
    %1394 = vmatpush1.msra.mxu0 0.0
    %1395 = vmatprep.subr.mxu0 0.0
    %1396 = vmatpush1.msra.mxu0 0.0
    %1397 = vmatprep.subr.mxu0 0.0
    %1398 = vmatpush1.msra.mxu0 0.0
    %1399 = vmatprep.subr.mxu0 0.0
    %1400 = vmatpush1.msra.mxu0 0.0
    %1401 = vmatprep.subr.mxu0 0.0
    %1402 = vmatpush1.msra.mxu0 0.0
    %1403 = vmatprep.subr.mxu0 0.0
    %1404 = vmatpush1.msra.mxu0 0.0
    %1405 = vmatprep.subr.mxu0 0.0
    %1406 = vmatpush1.msra.mxu0 0.0
    %1407 = vmatprep.subr.mxu0 0.0
    %1408 = vmatpush1.msra.mxu0 0.0
    %1409 = vmatprep.subr.mxu0 0.0
    %1410 = vmatpush1.msra.mxu0 0.0
    %1411 = vmatprep.subr.mxu0 0.0
    %1412 = vmatpush1.msra.mxu0 0.0
    %1413 = vmatprep.subr.mxu0 0.0
    %1414 = vmatpush1.msra.mxu0 0.0
    %1415 = vmatprep.subr.mxu0 0.0
    %1416 = vmatpush1.msra.mxu0 0.0
    %1417 = vmatprep.subr.mxu0 0.0
    %1418 = vmatpush1.msra.mxu0 0.0
    %1419 = vmatprep.subr.mxu0 0.0
    %1420 = vmatpush1.msra.mxu0 0.0
    %1421 = vmatprep.subr.mxu0 0.0
    %1422 = vmatpush1.msra.mxu0 0.0
    %1423 = vmatprep.subr.mxu0 0.0
    %1424 = vmatpush1.msra.mxu0 0.0
    %1425 = vmatprep.subr.mxu0 0.0
    %1426 = vmatpush1.msra.mxu0 0.0
    %1427 = vmatprep.subr.mxu0 0.0
    %1428 = vmatpush1.msra.mxu0 0.0
    %1429 = vmatprep.subr.mxu0 0.0
    %1430 = vmatpush1.msra.mxu0 0.0
    %1431 = vmatprep.subr.mxu0 0.0
    %1432 = vmatpush1.msra.mxu0 0.0
    %1433 = vmatprep.subr.mxu0 0.0
    %1434 = vmatpush1.msra.mxu0 0.0
    %1435 = vmatprep.subr.mxu0 0.0
    %1436 = vmatpush1.msra.mxu0 0.0
    %1437 = vmatprep.mubr.f32.mxu0 0.0
    %1438 = vmatmul.mubr.f32.gmra.mrb[0].mxu0 %v1371
    %v1439 = vpop.f32.mrb[0].mxu0
    %v1440 = vadd.f32 0.0, %v1439
    %v1441 = vpop.f32.mrb[0].mxu0
    %1442 = vdwg.mxu0
    %1443 = vrot.lane.b32.xlu0 %v265, 112
    %v1444 = vpop.permute.xlu0 %1443
    %v1447 = vsel %vm351, %v1060, 0
    %1449 = vmatprep.subr.mxu0 0.0
    %1450 = vmatpush1.msra.mxu0 %v1444
    %1451 = vmatprep.subr.mxu0 0.0
    %1452 = vmatpush1.msra.mxu0 0.0
    %1453 = vmatprep.subr.mxu0 0.0
    %1454 = vmatpush1.msra.mxu0 0.0
    %1455 = vmatprep.subr.mxu0 0.0
    %1456 = vmatpush1.msra.mxu0 0.0
    %1457 = vmatprep.subr.mxu0 0.0
    %1458 = vmatpush1.msra.mxu0 0.0
    %1459 = vmatprep.subr.mxu0 0.0
    %1460 = vmatpush1.msra.mxu0 0.0
    %1461 = vmatprep.subr.mxu0 0.0
    %1462 = vmatpush1.msra.mxu0 0.0
    %1463 = vmatprep.subr.mxu0 0.0
    %1464 = vmatpush1.msra.mxu0 0.0
    %1465 = vmatprep.subr.mxu0 0.0
    %1466 = vmatpush1.msra.mxu0 0.0
    %1467 = vmatprep.subr.mxu0 0.0
    %1468 = vmatpush1.msra.mxu0 0.0
    %1469 = vmatprep.subr.mxu0 0.0
    %1470 = vmatpush1.msra.mxu0 0.0
    %1471 = vmatprep.subr.mxu0 0.0
    %1472 = vmatpush1.msra.mxu0 0.0
    %1473 = vmatprep.subr.mxu0 0.0
    %1474 = vmatpush1.msra.mxu0 0.0
    %1475 = vmatprep.subr.mxu0 0.0
    %1476 = vmatpush1.msra.mxu0 0.0
    %1477 = vmatprep.subr.mxu0 0.0
    %1478 = vmatpush1.msra.mxu0 0.0
    %1479 = vmatprep.subr.mxu0 0.0
    %1480 = vmatpush1.msra.mxu0 0.0
    %1481 = vmatprep.subr.mxu0 0.0
    %1482 = vmatpush1.msra.mxu0 0.0
    %1483 = vmatprep.subr.mxu0 0.0
    %1484 = vmatpush1.msra.mxu0 0.0
    %1485 = vmatprep.subr.mxu0 0.0
    %1486 = vmatpush1.msra.mxu0 0.0
    %1487 = vmatprep.subr.mxu0 0.0
    %1488 = vmatpush1.msra.mxu0 0.0
    %1489 = vmatprep.subr.mxu0 0.0
    %1490 = vmatpush1.msra.mxu0 0.0
    %1491 = vmatprep.subr.mxu0 0.0
    %1492 = vmatpush1.msra.mxu0 0.0
    %1493 = vmatprep.subr.mxu0 0.0
    %1494 = vmatpush1.msra.mxu0 0.0
    %1495 = vmatprep.subr.mxu0 0.0
    %1496 = vmatpush1.msra.mxu0 0.0
    %1497 = vmatprep.subr.mxu0 0.0
    %1498 = vmatpush1.msra.mxu0 0.0
    %1499 = vmatprep.subr.mxu0 0.0
    %1500 = vmatpush1.msra.mxu0 0.0
    %1501 = vmatprep.subr.mxu0 0.0
    %1502 = vmatpush1.msra.mxu0 0.0
    %1503 = vmatprep.subr.mxu0 0.0
    %1504 = vmatpush1.msra.mxu0 0.0
    %1505 = vmatprep.subr.mxu0 0.0
    %1506 = vmatpush1.msra.mxu0 0.0
    %1507 = vmatprep.subr.mxu0 0.0
    %1508 = vmatpush1.msra.mxu0 0.0
    %1509 = vmatprep.subr.mxu0 0.0
    %1510 = vmatpush1.msra.mxu0 0.0
    %1511 = vmatprep.subr.mxu0 0.0
    %1512 = vmatpush1.msra.mxu0 0.0
    %1513 = vmatprep.mubr.f32.mxu0 0.0
    %1514 = vmatmul.mubr.f32.gmra.mrb[0].mxu0 %v1447
    %v1515 = vpop.f32.mrb[0].mxu0
    %v1516 = vadd.f32 0.0, %v1515
    %v1517 = vpop.f32.mrb[0].mxu0
    %1518 = vdwg.mxu0
    %1519 = vrot.lane.b32.xlu0 %v335, 112
    %v1520 = vpop.permute.xlu0 %1519
    %v1523 = vsel %vm351, %v1061, 0
    %1525 = vmatprep.subr.mxu0 0.0
    %1526 = vmatpush1.msra.mxu0 %v1520
    %1527 = vmatprep.subr.mxu0 0.0
    %1528 = vmatpush1.msra.mxu0 0.0
    %1529 = vmatprep.subr.mxu0 0.0
    %1530 = vmatpush1.msra.mxu0 0.0
    %1531 = vmatprep.subr.mxu0 0.0
    %1532 = vmatpush1.msra.mxu0 0.0
    %1533 = vmatprep.subr.mxu0 0.0
    %1534 = vmatpush1.msra.mxu0 0.0
    %1535 = vmatprep.subr.mxu0 0.0
    %1536 = vmatpush1.msra.mxu0 0.0
    %1537 = vmatprep.subr.mxu0 0.0
    %1538 = vmatpush1.msra.mxu0 0.0
    %1539 = vmatprep.subr.mxu0 0.0
    %1540 = vmatpush1.msra.mxu0 0.0
    %1541 = vmatprep.subr.mxu0 0.0
    %1542 = vmatpush1.msra.mxu0 0.0
    %1543 = vmatprep.subr.mxu0 0.0
    %1544 = vmatpush1.msra.mxu0 0.0
    %1545 = vmatprep.subr.mxu0 0.0
    %1546 = vmatpush1.msra.mxu0 0.0
    %1547 = vmatprep.subr.mxu0 0.0
    %1548 = vmatpush1.msra.mxu0 0.0
    %1549 = vmatprep.subr.mxu0 0.0
    %1550 = vmatpush1.msra.mxu0 0.0
    %1551 = vmatprep.subr.mxu0 0.0
    %1552 = vmatpush1.msra.mxu0 0.0
    %1553 = vmatprep.subr.mxu0 0.0
    %1554 = vmatpush1.msra.mxu0 0.0
    %1555 = vmatprep.subr.mxu0 0.0
    %1556 = vmatpush1.msra.mxu0 0.0
    %1557 = vmatprep.subr.mxu0 0.0
    %1558 = vmatpush1.msra.mxu0 0.0
    %1559 = vmatprep.subr.mxu0 0.0
    %1560 = vmatpush1.msra.mxu0 0.0
    %1561 = vmatprep.subr.mxu0 0.0
    %1562 = vmatpush1.msra.mxu0 0.0
    %1563 = vmatprep.subr.mxu0 0.0
    %1564 = vmatpush1.msra.mxu0 0.0
    %1565 = vmatprep.subr.mxu0 0.0
    %1566 = vmatpush1.msra.mxu0 0.0
    %1567 = vmatprep.subr.mxu0 0.0
    %1568 = vmatpush1.msra.mxu0 0.0
    %1569 = vmatprep.subr.mxu0 0.0
    %1570 = vmatpush1.msra.mxu0 0.0
    %1571 = vmatprep.subr.mxu0 0.0
    %1572 = vmatpush1.msra.mxu0 0.0
    %1573 = vmatprep.subr.mxu0 0.0
    %1574 = vmatpush1.msra.mxu0 0.0
    %1575 = vmatprep.subr.mxu0 0.0
    %1576 = vmatpush1.msra.mxu0 0.0
    %1577 = vmatprep.subr.mxu0 0.0
    %1578 = vmatpush1.msra.mxu0 0.0
    %1579 = vmatprep.subr.mxu0 0.0
    %1580 = vmatpush1.msra.mxu0 0.0
    %1581 = vmatprep.subr.mxu0 0.0
    %1582 = vmatpush1.msra.mxu0 0.0
    %1583 = vmatprep.subr.mxu0 0.0
    %1584 = vmatpush1.msra.mxu0 0.0
    %1585 = vmatprep.subr.mxu0 0.0
    %1586 = vmatpush1.msra.mxu0 0.0
    %1587 = vmatprep.subr.mxu0 0.0
    %1588 = vmatpush1.msra.mxu0 0.0
    %1589 = vmatprep.mubr.f32.mxu0 0.0
    %1590 = vmatmul.mubr.f32.gmra.mrb[0].mxu0 %v1523
    %v1591 = vpop.f32.mrb[0].mxu0
    %v1592 = vadd.f32 0.0, %v1591
    %v1593 = vpop.f32.mrb[0].mxu0
    %1594 = vdwg.mxu0
    %1595 = vrot.lane.b32.xlu0 %v340, 112
    %v1596 = vpop.permute.xlu0 %1595
    %v1599 = vsel %vm351, %v1062, 0
    %1601 = vmatprep.subr.mxu0 0.0
    %1602 = vmatpush1.msra.mxu0 %v1596
    %1603 = vmatprep.subr.mxu0 0.0
    %1604 = vmatpush1.msra.mxu0 0.0
    %1605 = vmatprep.subr.mxu0 0.0
    %1606 = vmatpush1.msra.mxu0 0.0
    %1607 = vmatprep.subr.mxu0 0.0
    %1608 = vmatpush1.msra.mxu0 0.0
    %1609 = vmatprep.subr.mxu0 0.0
    %1610 = vmatpush1.msra.mxu0 0.0
    %1611 = vmatprep.subr.mxu0 0.0
    %1612 = vmatpush1.msra.mxu0 0.0
    %1613 = vmatprep.subr.mxu0 0.0
    %1614 = vmatpush1.msra.mxu0 0.0
    %1615 = vmatprep.subr.mxu0 0.0
    %1616 = vmatpush1.msra.mxu0 0.0
    %1617 = vmatprep.subr.mxu0 0.0
    %1618 = vmatpush1.msra.mxu0 0.0
    %1619 = vmatprep.subr.mxu0 0.0
    %1620 = vmatpush1.msra.mxu0 0.0
    %1621 = vmatprep.subr.mxu0 0.0
    %1622 = vmatpush1.msra.mxu0 0.0
    %1623 = vmatprep.subr.mxu0 0.0
    %1624 = vmatpush1.msra.mxu0 0.0
    %1625 = vmatprep.subr.mxu0 0.0
    %1626 = vmatpush1.msra.mxu0 0.0
    %1627 = vmatprep.subr.mxu0 0.0
    %1628 = vmatpush1.msra.mxu0 0.0
    %1629 = vmatprep.subr.mxu0 0.0
    %1630 = vmatpush1.msra.mxu0 0.0
    %1631 = vmatprep.subr.mxu0 0.0
    %1632 = vmatpush1.msra.mxu0 0.0
    %1633 = vmatprep.subr.mxu0 0.0
    %1634 = vmatpush1.msra.mxu0 0.0
    %1635 = vmatprep.subr.mxu0 0.0
    %1636 = vmatpush1.msra.mxu0 0.0
    %1637 = vmatprep.subr.mxu0 0.0
    %1638 = vmatpush1.msra.mxu0 0.0
    %1639 = vmatprep.subr.mxu0 0.0
    %1640 = vmatpush1.msra.mxu0 0.0
    %1641 = vmatprep.subr.mxu0 0.0
    %1642 = vmatpush1.msra.mxu0 0.0
    %1643 = vmatprep.subr.mxu0 0.0
    %1644 = vmatpush1.msra.mxu0 0.0
    %1645 = vmatprep.subr.mxu0 0.0
    %1646 = vmatpush1.msra.mxu0 0.0
    %1647 = vmatprep.subr.mxu0 0.0
    %1648 = vmatpush1.msra.mxu0 0.0
    %1649 = vmatprep.subr.mxu0 0.0
    %1650 = vmatpush1.msra.mxu0 0.0
    %1651 = vmatprep.subr.mxu0 0.0
    %1652 = vmatpush1.msra.mxu0 0.0
    %1653 = vmatprep.subr.mxu0 0.0
    %1654 = vmatpush1.msra.mxu0 0.0
    %1655 = vmatprep.subr.mxu0 0.0
    %1656 = vmatpush1.msra.mxu0 0.0
    %1657 = vmatprep.subr.mxu0 0.0
    %1658 = vmatpush1.msra.mxu0 0.0
    %1659 = vmatprep.subr.mxu0 0.0
    %1660 = vmatpush1.msra.mxu0 0.0
    %1661 = vmatprep.subr.mxu0 0.0
    %1662 = vmatpush1.msra.mxu0 0.0
    %1663 = vmatprep.subr.mxu0 0.0
    %1664 = vmatpush1.msra.mxu0 0.0
    %1665 = vmatprep.mubr.f32.mxu0 0.0
    %1666 = vmatmul.mubr.f32.gmra.mrb[0].mxu0 %v1599
    %v1667 = vpop.f32.mrb[0].mxu0
    %v1668 = vadd.f32 0.0, %v1667
    %v1669 = vpop.f32.mrb[0].mxu0
    %1670 = vdwg.mxu0
    %v1671 = vld [vmem:[%s2] sm:$0xff]
    %v1672 = vld [vmem:[%s2 + $0x8] sm:$0xff]
    %v1673 = vld [vmem:[%s2 + $0x10] sm:$0xff]
    %v1674 = vld [vmem:[%s2 + $0x18] sm:$0xff]
    %v1676 = vsel %vm351, %v1136, 0
    %v1679 = vsel %vm351, %v1212, 0
    %1681 = vmatprep.subr.mxu0 0.0
    %1682 = vmatpush1.msra.mxu0 %v1671
    %1683 = vmatprep.subr.mxu0 0.0
    %1684 = vmatpush1.msra.mxu0 0.0
    %1685 = vmatprep.subr.mxu0 0.0
    %1686 = vmatpush1.msra.mxu0 0.0
    %1687 = vmatprep.subr.mxu0 0.0
    %1688 = vmatpush1.msra.mxu0 0.0
    %1689 = vmatprep.subr.mxu0 0.0
    %1690 = vmatpush1.msra.mxu0 0.0
    %1691 = vmatprep.subr.mxu0 0.0
    %1692 = vmatpush1.msra.mxu0 0.0
    %1693 = vmatprep.subr.mxu0 0.0
    %1694 = vmatpush1.msra.mxu0 0.0
    %1695 = vmatprep.subr.mxu0 0.0
    %1696 = vmatpush1.msra.mxu0 0.0
    %1697 = vmatprep.subr.mxu0 0.0
    %1698 = vmatpush1.msra.mxu0 0.0
    %1699 = vmatprep.subr.mxu0 0.0
    %1700 = vmatpush1.msra.mxu0 0.0
    %1701 = vmatprep.subr.mxu0 0.0
    %1702 = vmatpush1.msra.mxu0 0.0
    %1703 = vmatprep.subr.mxu0 0.0
    %1704 = vmatpush1.msra.mxu0 0.0
    %1705 = vmatprep.subr.mxu0 0.0
    %1706 = vmatpush1.msra.mxu0 0.0
    %1707 = vmatprep.subr.mxu0 0.0
    %1708 = vmatpush1.msra.mxu0 0.0
    %1709 = vmatprep.subr.mxu0 0.0
    %1710 = vmatpush1.msra.mxu0 0.0
    %1711 = vmatprep.subr.mxu0 0.0
    %1712 = vmatpush1.msra.mxu0 0.0
    %1713 = vmatprep.subr.mxu0 0.0
    %1714 = vmatpush1.msra.mxu0 0.0
    %1715 = vmatprep.subr.mxu0 0.0
    %1716 = vmatpush1.msra.mxu0 0.0
    %1717 = vmatprep.subr.mxu0 0.0
    %1718 = vmatpush1.msra.mxu0 0.0
    %1719 = vmatprep.subr.mxu0 0.0
    %1720 = vmatpush1.msra.mxu0 0.0
    %1721 = vmatprep.subr.mxu0 0.0
    %1722 = vmatpush1.msra.mxu0 0.0
    %1723 = vmatprep.subr.mxu0 0.0
    %1724 = vmatpush1.msra.mxu0 0.0
    %1725 = vmatprep.subr.mxu0 0.0
    %1726 = vmatpush1.msra.mxu0 0.0
    %1727 = vmatprep.subr.mxu0 0.0
    %1728 = vmatpush1.msra.mxu0 0.0
    %1729 = vmatprep.subr.mxu0 0.0
    %1730 = vmatpush1.msra.mxu0 0.0
    %1731 = vmatprep.subr.mxu0 0.0
    %1732 = vmatpush1.msra.mxu0 0.0
    %1733 = vmatprep.subr.mxu0 0.0
    %1734 = vmatpush1.msra.mxu0 0.0
    %1735 = vmatprep.subr.mxu0 0.0
    %1736 = vmatpush1.msra.mxu0 0.0
    %1737 = vmatprep.subr.mxu0 0.0
    %1738 = vmatpush1.msra.mxu0 0.0
    %1739 = vmatprep.subr.mxu0 0.0
    %1740 = vmatpush1.msra.mxu0 0.0
    %1741 = vmatprep.subr.mxu0 0.0
    %1742 = vmatpush1.msra.mxu0 0.0
    %1743 = vmatprep.subr.mxu0 0.0
    %1744 = vmatpush1.msra.mxu0 0.0
    %1745 = vmatprep.mubr.f32.mxu0 0.0
    %1746 = vmatmul.mubr.f32.gmra.mrb[0].mxu0 %v1676
    %v1747 = vpop.f32.mrb[0].mxu0
    %v1748 = vadd.f32 0.0, %v1747
    %v1749 = vpop.f32.mrb[0].mxu0
    %1750 = vmatprep.mubr.f32.mxu0 0.0
    %1751 = vmatmul.mubr.f32.gmra.mrb[0].mxu0 %v1679
    %v1752 = vpop.f32.mrb[0].mxu0
    %v1753 = vadd.f32 0.0, %v1752
    %v1754 = vpop.f32.mrb[0].mxu0
    %1755 = vdwg.mxu0
    %v1757 = vsel %vm351, %v1288, 0
    %v1760 = vsel %vm351, %v1364, 0
    %1762 = vmatprep.subr.mxu0 0.0
    %1763 = vmatpush1.msra.mxu0 %v1672
    %1764 = vmatprep.subr.mxu0 0.0
    %1765 = vmatpush1.msra.mxu0 0.0
    %1766 = vmatprep.subr.mxu0 0.0
    %1767 = vmatpush1.msra.mxu0 0.0
    %1768 = vmatprep.subr.mxu0 0.0
    %1769 = vmatpush1.msra.mxu0 0.0
    %1770 = vmatprep.subr.mxu0 0.0
    %1771 = vmatpush1.msra.mxu0 0.0
    %1772 = vmatprep.subr.mxu0 0.0
    %1773 = vmatpush1.msra.mxu0 0.0
    %1774 = vmatprep.subr.mxu0 0.0
    %1775 = vmatpush1.msra.mxu0 0.0
    %1776 = vmatprep.subr.mxu0 0.0
    %1777 = vmatpush1.msra.mxu0 0.0
    %1778 = vmatprep.subr.mxu0 0.0
    %1779 = vmatpush1.msra.mxu0 0.0
    %1780 = vmatprep.subr.mxu0 0.0
    %1781 = vmatpush1.msra.mxu0 0.0
    %1782 = vmatprep.subr.mxu0 0.0
    %1783 = vmatpush1.msra.mxu0 0.0
    %1784 = vmatprep.subr.mxu0 0.0
    %1785 = vmatpush1.msra.mxu0 0.0
    %1786 = vmatprep.subr.mxu0 0.0
    %1787 = vmatpush1.msra.mxu0 0.0
    %1788 = vmatprep.subr.mxu0 0.0
    %1789 = vmatpush1.msra.mxu0 0.0
    %1790 = vmatprep.subr.mxu0 0.0
    %1791 = vmatpush1.msra.mxu0 0.0
    %1792 = vmatprep.subr.mxu0 0.0
    %1793 = vmatpush1.msra.mxu0 0.0
    %1794 = vmatprep.subr.mxu0 0.0
    %1795 = vmatpush1.msra.mxu0 0.0
    %1796 = vmatprep.subr.mxu0 0.0
    %1797 = vmatpush1.msra.mxu0 0.0
    %1798 = vmatprep.subr.mxu0 0.0
    %1799 = vmatpush1.msra.mxu0 0.0
    %1800 = vmatprep.subr.mxu0 0.0
    %1801 = vmatpush1.msra.mxu0 0.0
    %1802 = vmatprep.subr.mxu0 0.0
    %1803 = vmatpush1.msra.mxu0 0.0
    %1804 = vmatprep.subr.mxu0 0.0
    %1805 = vmatpush1.msra.mxu0 0.0
    %1806 = vmatprep.subr.mxu0 0.0
    %1807 = vmatpush1.msra.mxu0 0.0
    %1808 = vmatprep.subr.mxu0 0.0
    %1809 = vmatpush1.msra.mxu0 0.0
    %1810 = vmatprep.subr.mxu0 0.0
    %1811 = vmatpush1.msra.mxu0 0.0
    %1812 = vmatprep.subr.mxu0 0.0
    %1813 = vmatpush1.msra.mxu0 0.0
    %1814 = vmatprep.subr.mxu0 0.0
    %1815 = vmatpush1.msra.mxu0 0.0
    %1816 = vmatprep.subr.mxu0 0.0
    %1817 = vmatpush1.msra.mxu0 0.0
    %1818 = vmatprep.subr.mxu0 0.0
    %1819 = vmatpush1.msra.mxu0 0.0
    %1820 = vmatprep.subr.mxu0 0.0
    %1821 = vmatpush1.msra.mxu0 0.0
    %1822 = vmatprep.subr.mxu0 0.0
    %1823 = vmatpush1.msra.mxu0 0.0
    %1824 = vmatprep.subr.mxu0 0.0
    %1825 = vmatpush1.msra.mxu0 0.0
    %1826 = vmatprep.mubr.f32.mxu0 0.0
    %1827 = vmatmul.mubr.f32.gmra.mrb[0].mxu0 %v1757
    %v1828 = vpop.f32.mrb[0].mxu0
    %v1829 = vadd.f32 0.0, %v1828
    %v1830 = vpop.f32.mrb[0].mxu0
    %1831 = vmatprep.mubr.f32.mxu0 0.0
    %1832 = vmatmul.mubr.f32.gmra.mrb[0].mxu0 %v1760
    %v1833 = vpop.f32.mrb[0].mxu0
    %v1834 = vadd.f32 0.0, %v1833
    %v1835 = vpop.f32.mrb[0].mxu0
    %1836 = vdwg.mxu0
    %v1838 = vsel %vm351, %v1440, 0
    %v1841 = vsel %vm351, %v1516, 0
    %1843 = vmatprep.subr.mxu0 0.0
    %1844 = vmatpush1.msra.mxu0 %v1673
    %1845 = vmatprep.subr.mxu0 0.0
    %1846 = vmatpush1.msra.mxu0 0.0
    %1847 = vmatprep.subr.mxu0 0.0
    %1848 = vmatpush1.msra.mxu0 0.0
    %1849 = vmatprep.subr.mxu0 0.0
    %1850 = vmatpush1.msra.mxu0 0.0
    %1851 = vmatprep.subr.mxu0 0.0
    %1852 = vmatpush1.msra.mxu0 0.0
    %1853 = vmatprep.subr.mxu0 0.0
    %1854 = vmatpush1.msra.mxu0 0.0
    %1855 = vmatprep.subr.mxu0 0.0
    %1856 = vmatpush1.msra.mxu0 0.0
    %1857 = vmatprep.subr.mxu0 0.0
    %1858 = vmatpush1.msra.mxu0 0.0
    %1859 = vmatprep.subr.mxu0 0.0
    %1860 = vmatpush1.msra.mxu0 0.0
    %1861 = vmatprep.subr.mxu0 0.0
    %1862 = vmatpush1.msra.mxu0 0.0
    %1863 = vmatprep.subr.mxu0 0.0
    %1864 = vmatpush1.msra.mxu0 0.0
    %1865 = vmatprep.subr.mxu0 0.0
    %1866 = vmatpush1.msra.mxu0 0.0
    %1867 = vmatprep.subr.mxu0 0.0
    %1868 = vmatpush1.msra.mxu0 0.0
    %1869 = vmatprep.subr.mxu0 0.0
    %1870 = vmatpush1.msra.mxu0 0.0
    %1871 = vmatprep.subr.mxu0 0.0
    %1872 = vmatpush1.msra.mxu0 0.0
    %1873 = vmatprep.subr.mxu0 0.0
    %1874 = vmatpush1.msra.mxu0 0.0
    %1875 = vmatprep.subr.mxu0 0.0
    %1876 = vmatpush1.msra.mxu0 0.0
    %1877 = vmatprep.subr.mxu0 0.0
    %1878 = vmatpush1.msra.mxu0 0.0
    %1879 = vmatprep.subr.mxu0 0.0
    %1880 = vmatpush1.msra.mxu0 0.0
    %1881 = vmatprep.subr.mxu0 0.0
    %1882 = vmatpush1.msra.mxu0 0.0
    %1883 = vmatprep.subr.mxu0 0.0
    %1884 = vmatpush1.msra.mxu0 0.0
    %1885 = vmatprep.subr.mxu0 0.0
    %1886 = vmatpush1.msra.mxu0 0.0
    %1887 = vmatprep.subr.mxu0 0.0
    %1888 = vmatpush1.msra.mxu0 0.0
    %1889 = vmatprep.subr.mxu0 0.0
    %1890 = vmatpush1.msra.mxu0 0.0
    %1891 = vmatprep.subr.mxu0 0.0
    %1892 = vmatpush1.msra.mxu0 0.0
    %1893 = vmatprep.subr.mxu0 0.0
    %1894 = vmatpush1.msra.mxu0 0.0
    %1895 = vmatprep.subr.mxu0 0.0
    %1896 = vmatpush1.msra.mxu0 0.0
    %1897 = vmatprep.subr.mxu0 0.0
    %1898 = vmatpush1.msra.mxu0 0.0
    %1899 = vmatprep.subr.mxu0 0.0
    %1900 = vmatpush1.msra.mxu0 0.0
    %1901 = vmatprep.subr.mxu0 0.0
    %1902 = vmatpush1.msra.mxu0 0.0
    %1903 = vmatprep.subr.mxu0 0.0
    %1904 = vmatpush1.msra.mxu0 0.0
    %1905 = vmatprep.subr.mxu0 0.0
    %1906 = vmatpush1.msra.mxu0 0.0
    %1907 = vmatprep.mubr.f32.mxu0 0.0
    %1908 = vmatmul.mubr.f32.gmra.mrb[0].mxu0 %v1838
    %v1909 = vpop.f32.mrb[0].mxu0
    %v1910 = vadd.f32 0.0, %v1909
    %v1911 = vpop.f32.mrb[0].mxu0
    %1912 = vmatprep.mubr.f32.mxu0 0.0
    %1913 = vmatmul.mubr.f32.gmra.mrb[0].mxu0 %v1841
    %v1914 = vpop.f32.mrb[0].mxu0
    %v1915 = vadd.f32 0.0, %v1914
    %v1916 = vpop.f32.mrb[0].mxu0
    %1917 = vdwg.mxu0
    %v1919 = vsel %vm351, %v1592, 0
    %v1922 = vsel %vm351, %v1668, 0
    %1924 = vmatprep.subr.mxu0 0.0
    %1925 = vmatpush1.msra.mxu0 %v1674
    %1926 = vmatprep.subr.mxu0 0.0
    %1927 = vmatpush1.msra.mxu0 0.0
    %1928 = vmatprep.subr.mxu0 0.0
    %1929 = vmatpush1.msra.mxu0 0.0
    %1930 = vmatprep.subr.mxu0 0.0
    %1931 = vmatpush1.msra.mxu0 0.0
    %1932 = vmatprep.subr.mxu0 0.0
    %1933 = vmatpush1.msra.mxu0 0.0
    %1934 = vmatprep.subr.mxu0 0.0
    %1935 = vmatpush1.msra.mxu0 0.0
    %1936 = vmatprep.subr.mxu0 0.0
    %1937 = vmatpush1.msra.mxu0 0.0
    %1938 = vmatprep.subr.mxu0 0.0
    %1939 = vmatpush1.msra.mxu0 0.0
    %1940 = vmatprep.subr.mxu0 0.0
    %1941 = vmatpush1.msra.mxu0 0.0
    %1942 = vmatprep.subr.mxu0 0.0
    %1943 = vmatpush1.msra.mxu0 0.0
    %1944 = vmatprep.subr.mxu0 0.0
    %1945 = vmatpush1.msra.mxu0 0.0
    %1946 = vmatprep.subr.mxu0 0.0
    %1947 = vmatpush1.msra.mxu0 0.0
    %1948 = vmatprep.subr.mxu0 0.0
    %1949 = vmatpush1.msra.mxu0 0.0
    %1950 = vmatprep.subr.mxu0 0.0
    %1951 = vmatpush1.msra.mxu0 0.0
    %1952 = vmatprep.subr.mxu0 0.0
    %1953 = vmatpush1.msra.mxu0 0.0
    %1954 = vmatprep.subr.mxu0 0.0
    %1955 = vmatpush1.msra.mxu0 0.0
    %1956 = vmatprep.subr.mxu0 0.0
    %1957 = vmatpush1.msra.mxu0 0.0
    %1958 = vmatprep.subr.mxu0 0.0
    %1959 = vmatpush1.msra.mxu0 0.0
    %1960 = vmatprep.subr.mxu0 0.0
    %1961 = vmatpush1.msra.mxu0 0.0
    %1962 = vmatprep.subr.mxu0 0.0
    %1963 = vmatpush1.msra.mxu0 0.0
    %1964 = vmatprep.subr.mxu0 0.0
    %1965 = vmatpush1.msra.mxu0 0.0
    %1966 = vmatprep.subr.mxu0 0.0
    %1967 = vmatpush1.msra.mxu0 0.0
    %1968 = vmatprep.subr.mxu0 0.0
    %1969 = vmatpush1.msra.mxu0 0.0
    %1970 = vmatprep.subr.mxu0 0.0
    %1971 = vmatpush1.msra.mxu0 0.0
    %1972 = vmatprep.subr.mxu0 0.0
    %1973 = vmatpush1.msra.mxu0 0.0
    %1974 = vmatprep.subr.mxu0 0.0
    %1975 = vmatpush1.msra.mxu0 0.0
    %1976 = vmatprep.subr.mxu0 0.0
    %1977 = vmatpush1.msra.mxu0 0.0
    %1978 = vmatprep.subr.mxu0 0.0
    %1979 = vmatpush1.msra.mxu0 0.0
    %1980 = vmatprep.subr.mxu0 0.0
    %1981 = vmatpush1.msra.mxu0 0.0
    %1982 = vmatprep.subr.mxu0 0.0
    %1983 = vmatpush1.msra.mxu0 0.0
    %1984 = vmatprep.subr.mxu0 0.0
    %1985 = vmatpush1.msra.mxu0 0.0
    %1986 = vmatprep.subr.mxu0 0.0
    %1987 = vmatpush1.msra.mxu0 0.0
    %1988 = vmatprep.mubr.f32.mxu0 0.0
    %1989 = vmatmul.mubr.f32.gmra.mrb[0].mxu0 %v1919
    %v1990 = vpop.f32.mrb[0].mxu0
    %v1991 = vadd.f32 0.0, %v1990
    %v1992 = vpop.f32.mrb[0].mxu0
    %1993 = vmatprep.mubr.f32.mxu0 0.0
    %1994 = vmatmul.mubr.f32.gmra.mrb[0].mxu0 %v1922
    %v1995 = vpop.f32.mrb[0].mxu0
    %v1996 = vadd.f32 0.0, %v1995
    %v1997 = vpop.f32.mrb[0].mxu0
    %1998 = vdwg.mxu0
    %v1999 = vsel %vm36, %v1748, 0.0
    %v2000 = vsel %vm36, %v1829, 0.0
    %v2001 = vadd.f32 %v1999, %v2000
    %v2002 = vsel %vm36, %v1910, 0.0
    %v2003 = vadd.f32 %v2001, %v2002
    %v2004 = vsel %vm36, %v1991, 0.0
    %v2005 = vadd.f32 %v2003, %v2004
    %v2006 = vsel %vm36, %v1753, 0.0
    %v2007 = vsel %vm36, %v1834, 0.0
    %v2008 = vadd.f32 %v2006, %v2007
    %v2009 = vsel %vm36, %v1915, 0.0
    %v2010 = vadd.f32 %v2008, %v2009
    %v2011 = vsel %vm36, %v1996, 0.0
    %v2012 = vadd.f32 %v2010, %v2011
    %v2013 = vld [vmem:[%s3] sm:$0x1]
    %v2015 = vlaneseq
    %v2016 = vshrl.u32 %v2015, 7
    %v2017 = vsub.s32 0, %v2016
    %v2018 = vrot.slane %v2013, %v2017
    %v2020 = vadd.f32 %v2005, %v2018
    %v2021 = vadd.f32 %v2012, %v2018
    %2022 = vst.msk [vmem:[#allocation2] sm:$0xff] %vm36, %v2020
    %2023 = vst.msk [vmem:[#allocation2 + $0x8] sm:$0xff] %vm36, %v2021
    // Predicated region
    $region18: #{tpu_custom_call.1} parent=1 // pred_check
      _
    $region19: #{tpu_custom_call.1} parent=1 // pred_check_branch
      %2025 = sbr.rel (0) target = $region21
    $region20: #{tpu_custom_call.1} parent=1 // pred_region
      %s2027 = ssub.s32 256, 256
      %2028 = vsyncadd [#allocation3], %s2027
      %s2029 = sshll.u32 [#allocation2], 4
      %s2030 = int_to_ptr.vmem [resolvable:$true] %s2029
      %2035 = dma.vmem_to_hbm [thread:$0]  %s2030, 256, %s4, [#allocation3], 128, 128, 8
    $region21: #{tpu_custom_call.1} parent=1 // pred_fallthru
      _
    // Predicated region
    $region22: #{tpu_custom_call.1} parent=1 // pred_check
      _
    $region23: #{tpu_custom_call.1} parent=1 // pred_check_branch
      %2037 = sbr.rel (0) target = $region25
    $region24: #{tpu_custom_call.1} parent=1 // pred_region
      %2038 = dma.done [#allocation3], 256
    $region25: #{tpu_custom_call.1} parent=1 // pred_fallthru
      _
    %2039 = vsyncpa [#allocation3], 1

</llo_original>
